<compile_context>
chip_gen: v6e
topology: v6e:2x2x1
jax: 0.10.0
libtpu: 0.0.40
codegen_flags: <defaults>
</compile_context>

<pallas_src>
import jax
import jax.numpy as jnp
from jax import lax
from jax.experimental import pallas as pl
from jax.experimental.pallas import tpu as pltpu


def _hardshrink(v, lambd=0.2):
    return jnp.where(jnp.abs(v) > lambd, v, jnp.zeros_like(v))


def basic_block1_pallas(x, w_conv1, bn_gamma, bn_beta, bn_mean, bn_var, bn_eps,
                        w_eca, w_sa, b_sa):
    """Fused forward of BasicBlock1 (stride=1, downsample=None, inplanes==planes).

    x       : (B, C, H, W)  NCHW input (native dtype)
    w_conv1 : (C, C, 3, 3)  conv3x3 weight (no bias)
    bn_*    : (C,)          BatchNorm2d eval-mode parameters / running stats
    w_eca   : (1, 1, 3)     eca_layer Conv1d weight (no bias)
    w_sa    : (1, 2, 3, 3)  SpatialAttention Conv2d weight (k=3, pad=2, dilation=2)
    b_sa    : (1,)          SpatialAttention Conv2d bias
    returns : (B, 2*C*H*W)  == torch.cat([out1.view(B,-1), out2.view(B,-1)], dim=1)
    """
    B, C, H, W = x.shape
    HW = H * W
    assert w_conv1.shape == (C, C, 3, 3), "residual add requires planes == inplanes"
    f32 = jnp.float32

    # ---- tiny parameter prep (O(C^2), done once in XLA) ----
    # conv3x3 taps as (9, Cout, Cin): one (Cout,Cin) MXU matrix per (ky,kx) tap.
    w1_k = jnp.transpose(w_conv1.reshape(C, C, 9), (2, 0, 1)).astype(f32)
    inv_std = 1.0 / jnp.sqrt(bn_var.astype(f32) + bn_eps)
    bn_scale = (bn_gamma.astype(f32) * inv_std).reshape(C, 1)
    bn_bias = (bn_beta.astype(f32) - bn_mean.astype(f32) * bn_gamma.astype(f32) * inv_std).reshape(C, 1)
    # eca Conv1d(k=3, pad=1) over channels expressed as a banded (C,C) matrix -> one matmul.
    we = w_eca.reshape(3).astype(f32)
    eca_mat = (we[0] * jnp.eye(C, k=-1, dtype=f32)
               + we[1] * jnp.eye(C, dtype=f32)
               + we[2] * jnp.eye(C, k=1, dtype=f32))
    w_sa_k = w_sa.reshape(2, 9).astype(f32)
    b_sa_k = b_sa.reshape(1, 1).astype(f32)
    # Precomputed row/col index of each flattened pixel (for conv border masking in-kernel).
    row_ids = jnp.broadcast_to(jnp.arange(H, dtype=jnp.int32)[:, None], (H, W)).reshape(1, HW)
    col_ids = jnp.broadcast_to(jnp.arange(W, dtype=jnp.int32)[None, :], (H, W)).reshape(1, HW)

    # x stays NCHW / native dtype; flattening HW is a free view (no HBM transpose).
    x_k = x.reshape(B, C, HW)

    def kernel(x_ref, w1_ref, bns_ref, bnb_ref, ecam_ref, wsa_ref, bsa_ref,
               rid_ref, cid_ref, o_ref):
        xin = x_ref[0].astype(f32)          # (C, HW) — conv input and residual
        rid = rid_ref[...]                  # (1, HW) int32
        cid = cid_ref[...]                  # (1, HW) int32

        def shifted(v, dy, dx):
            # u[..., h*W + w] = v[..., (h+dy)*W + (w+dx)], zero outside the image.
            s = dy * W + dx
            if s > 0:
                pad = jnp.zeros(v.shape[:-1] + (s,), v.dtype)
                u = jnp.concatenate([v[..., s:], pad], axis=-1)
            elif s < 0:
                pad = jnp.zeros(v.shape[:-1] + (-s,), v.dtype)
                u = jnp.concatenate([pad, v[..., :s]], axis=-1)
            else:
                u = v
            conds = []
            if dy > 0:
                conds.append(rid < H - dy)
            elif dy < 0:
                conds.append(rid >= -dy)
            if dx > 0:
                conds.append(cid < W - dx)
            elif dx < 0:
                conds.append(cid >= -dx)
            if not conds:
                return u
            valid = conds[0]
            for c in conds[1:]:
                valid = jnp.logical_and(valid, c)
            return jnp.where(valid, u, jnp.zeros_like(u))

        # ---- conv3x3 (stride=1, pad=1, no bias): 9 MXU matmuls over shifted images ----
        w_taps = w1_ref[...]                                       # (9, C, C)
        acc = jnp.zeros((C, HW), f32)
        for ky in range(3):
            for kx in range(3):
                xs = shifted(xin, ky - 1, kx - 1)                  # (C, HW)
                acc = acc + jnp.dot(w_taps[ky * 3 + kx], xs,
                                    preferred_element_type=f32)

        # ---- BatchNorm (eval) + ReLU ----
        out = jnp.maximum(acc * bns_ref[...] + bnb_ref[...], 0.0)  # (C, HW)

        # ---- eca_layer: GAP -> Conv1d(k=3) over channels -> sigmoid -> hardshrink ----
        y = jnp.sum(out, axis=1, keepdims=True) * (1.0 / HW)       # (C, 1)
        z = jnp.dot(ecam_ref[...], y, preferred_element_type=f32)  # (C, 1)
        ca = _hardshrink(jax.nn.sigmoid(z))                        # (C, 1)
        out1 = (out * ca) * out                                    # == self.ca(out) * out

        # ---- SpatialAttention: [mean_c, max_c] -> Conv2d(2->1, k=3, dil=2, pad=2) ----
        avg_c = jnp.mean(out, axis=0, keepdims=True)               # (1, HW)
        max_c = jnp.max(out, axis=0, keepdims=True)                # (1, HW)
        wsa = wsa_ref[...]                                         # (2, 9)
        sa_lin = jnp.zeros((1, HW), f32)
        for ci, src in enumerate((avg_c, max_c)):
            for ky in range(3):
                for kx in range(3):
                    t = ky * 3 + kx
                    tap = wsa[ci:ci + 1, t:t + 1]                  # (1, 1)
                    sa_lin = sa_lin + shifted(src, 2 * (ky - 1), 2 * (kx - 1)) * tap
        sa_map = _hardshrink(jax.nn.sigmoid(sa_lin + bsa_ref[...]))   # (1, HW)
        out2 = sa_map * out                                        # == self.sa(out) * out

        # ---- residual add + ReLU; lane-dense stores in a cat-ready layout ----
        o_ref[0, 0] = jnp.maximum(out1 + xin, 0.0).astype(o_ref.dtype)
        o_ref[0, 1] = jnp.maximum(out2 + xin, 0.0).astype(o_ref.dtype)

    out = pl.pallas_call(
        kernel,
        out_shape=jax.ShapeDtypeStruct((B, 2, C, HW), x.dtype),
        grid=(B,),
        in_specs=[
            pl.BlockSpec((1, C, HW), lambda b: (b, 0, 0)),     # x (per-image block)
            pl.BlockSpec((9, C, C), lambda b: (0, 0, 0)),      # conv taps (resident)
            pl.BlockSpec((C, 1), lambda b: (0, 0)),            # BN scale
            pl.BlockSpec((C, 1), lambda b: (0, 0)),            # BN bias
            pl.BlockSpec((C, C), lambda b: (0, 0)),            # eca band matrix
            pl.BlockSpec((2, 9), lambda b: (0, 0)),            # SA conv taps
            pl.BlockSpec((1, 1), lambda b: (0, 0)),            # SA conv bias
            pl.BlockSpec((1, HW), lambda b: (0, 0)),           # row index of each pixel
            pl.BlockSpec((1, HW), lambda b: (0, 0)),           # col index of each pixel
        ],
        out_specs=pl.BlockSpec((1, 2, C, HW), lambda b: (b, 0, 0, 0)),
        compiler_params=pltpu.CompilerParams(
            dimension_semantics=("parallel",),
            vmem_limit_bytes=32 * 1024 * 1024,
        ),
    )(x_k, w1_k, bn_scale, bn_bias, eca_mat, w_sa_k, b_sa_k, row_ids, col_ids)

    # (B, 2, C, HW) -> (B, 2*C*H*W) is a free view; matches torch.cat of the two .view(B,-1)'s.
    return out.reshape(B, 2 * C * HW)


def basic_block1_ref(x, w_conv1, bn_gamma, bn_beta, bn_mean, bn_var, bn_eps,
                     w_eca, w_sa, b_sa):
    """Pure-JAX reference mirroring the PyTorch BasicBlock1.forward (eval-mode BN)."""
    B, C, H, W = x.shape
    xf = x.astype(jnp.float32)
    out = lax.conv_general_dilated(
        xf, w_conv1.astype(jnp.float32), window_strides=(1, 1),
        padding=((1, 1), (1, 1)), dimension_numbers=("NCHW", "OIHW", "NCHW"))
    s = bn_gamma / jnp.sqrt(bn_var + bn_eps)
    out = out * s[None, :, None, None] + (bn_beta - bn_mean * s)[None, :, None, None]
    out = jnp.maximum(out, 0.0)
    # eca_layer
    y = jnp.mean(out, axis=(2, 3))                                  # (B, C)
    we = w_eca.reshape(3)
    yp = jnp.pad(y, ((0, 0), (1, 1)))
    z = we[0] * yp[:, :-2] + we[1] * yp[:, 1:-1] + we[2] * yp[:, 2:]
    ca = _hardshrink(jax.nn.sigmoid(z))[:, :, None, None]
    out1 = (out * ca) * out
    # SpatialAttention
    cat = jnp.concatenate([jnp.mean(out, axis=1, keepdims=True),
                           jnp.max(out, axis=1, keepdims=True)], axis=1)
    sa = lax.conv_general_dilated(
        cat, w_sa.astype(jnp.float32), window_strides=(1, 1),
        padding=((2, 2), (2, 2)), rhs_dilation=(2, 2),
        dimension_numbers=("NCHW", "OIHW", "NCHW")) + b_sa.reshape(1, 1, 1, 1)
    sa_map = _hardshrink(jax.nn.sigmoid(sa))
    out2 = sa_map * out
    out1 = jnp.maximum(out1 + xf, 0.0)
    out2 = jnp.maximum(out2 + xf, 0.0)
    return jnp.concatenate([out1.reshape(B, -1), out2.reshape(B, -1)], axis=1)


if __name__ == "__main__":
    key = jax.random.PRNGKey(0)
    B, C, H, W = 2, 8, 16, 16       # inplanes == planes == 8, stride=1, downsample=None
    ks = jax.random.split(key, 8)
    x = jax.random.normal(ks[0], (B, C, H, W), dtype=jnp.float32)
    w_conv1 = jax.random.normal(ks[1], (C, C, 3, 3), dtype=jnp.float32) * (1.0 / jnp.sqrt(9.0 * C))
    bn_gamma = 1.0 + 0.1 * jax.random.normal(ks[2], (C,), dtype=jnp.float32)
    bn_beta = 0.1 * jax.random.normal(ks[3], (C,), dtype=jnp.float32)
    bn_mean = 0.1 * jax.random.normal(ks[4], (C,), dtype=jnp.float32)
    bn_var = 1.0 + 0.1 * jnp.abs(jax.random.normal(ks[5], (C,), dtype=jnp.float32))
    bn_eps = 1e-5
    w_eca = jax.random.normal(ks[6], (1, 1, 3), dtype=jnp.float32) * 0.5
    k7, k8 = jax.random.split(ks[7])
    w_sa = jax.random.normal(k7, (1, 2, 3, 3), dtype=jnp.float32) * (1.0 / jnp.sqrt(18.0))
    b_sa = 0.1 * jax.random.normal(k8, (1,), dtype=jnp.float32)

    out = jax.block_until_ready(basic_block1_pallas(
        x, w_conv1, bn_gamma, bn_beta, bn_mean, bn_var, bn_eps, w_eca, w_sa, b_sa))
    ref = jax.block_until_ready(basic_block1_ref(
        x, w_conv1, bn_gamma, bn_beta, bn_mean, bn_var, bn_eps, w_eca, w_sa, b_sa))

    assert out.shape == (B, 2 * C * H * W)
    assert jnp.allclose(out, ref, atol=1e-3, rtol=1e-3), float(jnp.max(jnp.abs(out - ref)))
    print("KERNEL_OK")
</pallas_src>

<mosaic_0001>
module attributes {stable_mosaic.version = 11 : i64} {
  func.func @kernel(%arg0: i32, %arg1: memref<1x8x256xf32, #tpu.memory_space<vmem>>, %arg2: memref<9x8x8xf32, #tpu.memory_space<vmem>>, %arg3: memref<8x1xf32, #tpu.memory_space<vmem>>, %arg4: memref<8x1xf32, #tpu.memory_space<vmem>>, %arg5: memref<8x8xf32, #tpu.memory_space<vmem>>, %arg6: memref<2x9xf32, #tpu.memory_space<vmem>>, %arg7: memref<1x1xf32, #tpu.memory_space<vmem>>, %arg8: memref<1x256xi32, #tpu.memory_space<vmem>>, %arg9: memref<1x256xi32, #tpu.memory_space<vmem>>, %arg10: memref<1x2x8x256xf32, #tpu.memory_space<vmem>>) attributes {dimension_semantics = [#tpu.dimension_semantics<parallel>], iteration_bounds = array<i64: 2>, scalar_prefetch = 0 : i64, scratch_operands = 0 : i64, tpu.core_type = #tpu.core_type<tc>, window_params = [{transform_indices = @transform_0, window_bounds = array<i64: 1, 8, 256>}, {pipeline_mode = #tpu.pipeline_mode<synchronous>, transform_indices = @transform_1, window_bounds = array<i64: 9, 8, 8>}, {pipeline_mode = #tpu.pipeline_mode<synchronous>, transform_indices = @transform_2, window_bounds = array<i64: 8, 1>}, {pipeline_mode = #tpu.pipeline_mode<synchronous>, transform_indices = @transform_3, window_bounds = array<i64: 8, 1>}, {pipeline_mode = #tpu.pipeline_mode<synchronous>, transform_indices = @transform_4, window_bounds = array<i64: 8, 8>}, {pipeline_mode = #tpu.pipeline_mode<synchronous>, transform_indices = @transform_5, window_bounds = array<i64: 2, 9>}, {pipeline_mode = #tpu.pipeline_mode<synchronous>, transform_indices = @transform_6, window_bounds = array<i64: 1, 1>}, {pipeline_mode = #tpu.pipeline_mode<synchronous>, transform_indices = @transform_7, window_bounds = array<i64: 1, 256>}, {pipeline_mode = #tpu.pipeline_mode<synchronous>, transform_indices = @transform_8, window_bounds = array<i64: 1, 256>}, {transform_indices = @transform_9, window_bounds = array<i64: 1, 2, 8, 256>}]} {
    %c0 = arith.constant 0 : index
    %c0_0 = arith.constant 0 : index
    %c0_1 = arith.constant 0 : index
    %0 = vector.load %arg1[%c0, %c0_0, %c0_1] : memref<1x8x256xf32, #tpu.memory_space<vmem>>, vector<1x8x256xf32>
    %1 = vector.shape_cast %0 : vector<1x8x256xf32> to vector<8x256xf32>
    %c0_2 = arith.constant 0 : index
    %c0_3 = arith.constant 0 : index
    %2 = vector.load %arg8[%c0_2, %c0_3] : memref<1x256xi32, #tpu.memory_space<vmem>>, vector<1x256xi32>
    %c0_4 = arith.constant 0 : index
    %c0_5 = arith.constant 0 : index
    %3 = vector.load %arg9[%c0_4, %c0_5] : memref<1x256xi32, #tpu.memory_space<vmem>>, vector<1x256xi32>
    %c0_6 = arith.constant 0 : index
    %c0_7 = arith.constant 0 : index
    %c0_8 = arith.constant 0 : index
    %4 = vector.load %arg2[%c0_6, %c0_7, %c0_8] : memref<9x8x8xf32, #tpu.memory_space<vmem>>, vector<9x8x8xf32>
    %cst = arith.constant 0.000000e+00 : f32
    %5 = vector.broadcast %cst : f32 to vector<8x256xf32>
    %cst_9 = arith.constant 0.000000e+00 : f32
    %6 = vector.broadcast %cst_9 : f32 to vector<8x17xf32>
    %7 = vector.extract_strided_slice %1 {offsets = [0, 0], sizes = [8, 239], strides = [1, 1]} : vector<8x256xf32> to vector<8x239xf32>
    %8 = tpu.concatenate %6, %7 in 1 : vector<8x17xf32>, vector<8x239xf32> -> vector<8x256xf32>
    %c1_i32 = arith.constant 1 : i32
    %9 = vector.broadcast %c1_i32 : i32 to vector<1x256xi32>
    %10 = arith.cmpi sge, %2, %9 : vector<1x256xi32>
    %c1_i32_10 = arith.constant 1 : i32
    %11 = vector.broadcast %c1_i32_10 : i32 to vector<1x256xi32>
    %12 = arith.cmpi sge, %3, %11 : vector<1x256xi32>
    %13 = arith.andi %10, %12 : vector<1x256xi1>
    %cst_11 = arith.constant 0.000000e+00 : f32
    %14 = vector.broadcast %cst_11 : f32 to vector<8x256xf32>
    %15 = vector.shape_cast %13 : vector<1x256xi1> to vector<1x256xi1>
    %16 = vector.broadcast %15 : vector<1x256xi1> to vector<8x256xi1>
    %17 = arith.select %16, %8, %14 : vector<8x256xi1>, vector<8x256xf32>
    %18 = vector.extract_strided_slice %4 {offsets = [0, 0, 0], sizes = [1, 8, 8], strides = [1, 1, 1]} : vector<9x8x8xf32> to vector<1x8x8xf32>
    %19 = vector.shape_cast %18 : vector<1x8x8xf32> to vector<8x8xf32>
    %cst_12 = arith.constant dense<0.000000e+00> : vector<8x256xf32>
    %20 = tpu.matmul %19, %17, %cst_12 {dimension_numbers = #tpu.dot_dimension_numbers<[1], [0], [0], [1], [0, 0, 1, 1], [], []>} : vector<8x8xf32>, vector<8x256xf32>, vector<8x256xf32> -> vector<8x256xf32>
    %21 = arith.addf %5, %20 : vector<8x256xf32>
    %cst_13 = arith.constant 0.000000e+00 : f32
    %22 = vector.broadcast %cst_13 : f32 to vector<8x16xf32>
    %23 = vector.extract_strided_slice %1 {offsets = [0, 0], sizes = [8, 240], strides = [1, 1]} : vector<8x256xf32> to vector<8x240xf32>
    %24 = tpu.concatenate %22, %23 in 1 : vector<8x16xf32>, vector<8x240xf32> -> vector<8x256xf32>
    %c1_i32_14 = arith.constant 1 : i32
    %25 = vector.broadcast %c1_i32_14 : i32 to vector<1x256xi32>
    %26 = arith.cmpi sge, %2, %25 : vector<1x256xi32>
    %cst_15 = arith.constant 0.000000e+00 : f32
    %27 = vector.broadcast %cst_15 : f32 to vector<8x256xf32>
    %28 = vector.shape_cast %26 : vector<1x256xi1> to vector<1x256xi1>
    %29 = vector.broadcast %28 : vector<1x256xi1> to vector<8x256xi1>
    %30 = arith.select %29, %24, %27 : vector<8x256xi1>, vector<8x256xf32>
    %31 = vector.extract_strided_slice %4 {offsets = [1, 0, 0], sizes = [1, 8, 8], strides = [1, 1, 1]} : vector<9x8x8xf32> to vector<1x8x8xf32>
    %32 = vector.shape_cast %31 : vector<1x8x8xf32> to vector<8x8xf32>
    %cst_16 = arith.constant dense<0.000000e+00> : vector<8x256xf32>
    %33 = tpu.matmul %32, %30, %cst_16 {dimension_numbers = #tpu.dot_dimension_numbers<[1], [0], [0], [1], [0, 0, 1, 1], [], []>} : vector<8x8xf32>, vector<8x256xf32>, vector<8x256xf32> -> vector<8x256xf32>
    %34 = arith.addf %21, %33 : vector<8x256xf32>
    %cst_17 = arith.constant 0.000000e+00 : f32
    %35 = vector.broadcast %cst_17 : f32 to vector<8x15xf32>
    %36 = vector.extract_strided_slice %1 {offsets = [0, 0], sizes = [8, 241], strides = [1, 1]} : vector<8x256xf32> to vector<8x241xf32>
    %37 = tpu.concatenate %35, %36 in 1 : vector<8x15xf32>, vector<8x241xf32> -> vector<8x256xf32>
    %c1_i32_18 = arith.constant 1 : i32
    %38 = vector.broadcast %c1_i32_18 : i32 to vector<1x256xi32>
    %39 = arith.cmpi sge, %2, %38 : vector<1x256xi32>
    %c15_i32 = arith.constant 15 : i32
    %40 = vector.broadcast %c15_i32 : i32 to vector<1x256xi32>
    %41 = arith.cmpi slt, %3, %40 : vector<1x256xi32>
    %42 = arith.andi %39, %41 : vector<1x256xi1>
    %cst_19 = arith.constant 0.000000e+00 : f32
    %43 = vector.broadcast %cst_19 : f32 to vector<8x256xf32>
    %44 = vector.shape_cast %42 : vector<1x256xi1> to vector<1x256xi1>
    %45 = vector.broadcast %44 : vector<1x256xi1> to vector<8x256xi1>
    %46 = arith.select %45, %37, %43 : vector<8x256xi1>, vector<8x256xf32>
    %47 = vector.extract_strided_slice %4 {offsets = [2, 0, 0], sizes = [1, 8, 8], strides = [1, 1, 1]} : vector<9x8x8xf32> to vector<1x8x8xf32>
    %48 = vector.shape_cast %47 : vector<1x8x8xf32> to vector<8x8xf32>
    %cst_20 = arith.constant dense<0.000000e+00> : vector<8x256xf32>
    %49 = tpu.matmul %48, %46, %cst_20 {dimension_numbers = #tpu.dot_dimension_numbers<[1], [0], [0], [1], [0, 0, 1, 1], [], []>} : vector<8x8xf32>, vector<8x256xf32>, vector<8x256xf32> -> vector<8x256xf32>
    %50 = arith.addf %34, %49 : vector<8x256xf32>
    %cst_21 = arith.constant 0.000000e+00 : f32
    %51 = vector.broadcast %cst_21 : f32 to vector<8x1xf32>
    %52 = vector.extract_strided_slice %1 {offsets = [0, 0], sizes = [8, 255], strides = [1, 1]} : vector<8x256xf32> to vector<8x255xf32>
    %53 = tpu.concatenate %51, %52 in 1 : vector<8x1xf32>, vector<8x255xf32> -> vector<8x256xf32>
    %c1_i32_22 = arith.constant 1 : i32
    %54 = vector.broadcast %c1_i32_22 : i32 to vector<1x256xi32>
    %55 = arith.cmpi sge, %3, %54 : vector<1x256xi32>
    %cst_23 = arith.constant 0.000000e+00 : f32
    %56 = vector.broadcast %cst_23 : f32 to vector<8x256xf32>
    %57 = vector.shape_cast %55 : vector<1x256xi1> to vector<1x256xi1>
    %58 = vector.broadcast %57 : vector<1x256xi1> to vector<8x256xi1>
    %59 = arith.select %58, %53, %56 : vector<8x256xi1>, vector<8x256xf32>
    %60 = vector.extract_strided_slice %4 {offsets = [3, 0, 0], sizes = [1, 8, 8], strides = [1, 1, 1]} : vector<9x8x8xf32> to vector<1x8x8xf32>
    %61 = vector.shape_cast %60 : vector<1x8x8xf32> to vector<8x8xf32>
    %cst_24 = arith.constant dense<0.000000e+00> : vector<8x256xf32>
    %62 = tpu.matmul %61, %59, %cst_24 {dimension_numbers = #tpu.dot_dimension_numbers<[1], [0], [0], [1], [0, 0, 1, 1], [], []>} : vector<8x8xf32>, vector<8x256xf32>, vector<8x256xf32> -> vector<8x256xf32>
    %63 = arith.addf %50, %62 : vector<8x256xf32>
    %64 = vector.extract_strided_slice %4 {offsets = [4, 0, 0], sizes = [1, 8, 8], strides = [1, 1, 1]} : vector<9x8x8xf32> to vector<1x8x8xf32>
    %65 = vector.shape_cast %64 : vector<1x8x8xf32> to vector<8x8xf32>
    %cst_25 = arith.constant dense<0.000000e+00> : vector<8x256xf32>
    %66 = tpu.matmul %65, %1, %cst_25 {dimension_numbers = #tpu.dot_dimension_numbers<[1], [0], [0], [1], [0, 0, 1, 1], [], []>} : vector<8x8xf32>, vector<8x256xf32>, vector<8x256xf32> -> vector<8x256xf32>
    %67 = arith.addf %63, %66 : vector<8x256xf32>
    %cst_26 = arith.constant 0.000000e+00 : f32
    %68 = vector.broadcast %cst_26 : f32 to vector<8x1xf32>
    %69 = vector.extract_strided_slice %1 {offsets = [0, 1], sizes = [8, 255], strides = [1, 1]} : vector<8x256xf32> to vector<8x255xf32>
    %70 = tpu.concatenate %69, %68 in 1 : vector<8x255xf32>, vector<8x1xf32> -> vector<8x256xf32>
    %c15_i32_27 = arith.constant 15 : i32
    %71 = vector.broadcast %c15_i32_27 : i32 to vector<1x256xi32>
    %72 = arith.cmpi slt, %3, %71 : vector<1x256xi32>
    %cst_28 = arith.constant 0.000000e+00 : f32
    %73 = vector.broadcast %cst_28 : f32 to vector<8x256xf32>
    %74 = vector.shape_cast %72 : vector<1x256xi1> to vector<1x256xi1>
    %75 = vector.broadcast %74 : vector<1x256xi1> to vector<8x256xi1>
    %76 = arith.select %75, %70, %73 : vector<8x256xi1>, vector<8x256xf32>
    %77 = vector.extract_strided_slice %4 {offsets = [5, 0, 0], sizes = [1, 8, 8], strides = [1, 1, 1]} : vector<9x8x8xf32> to vector<1x8x8xf32>
    %78 = vector.shape_cast %77 : vector<1x8x8xf32> to vector<8x8xf32>
    %cst_29 = arith.constant dense<0.000000e+00> : vector<8x256xf32>
    %79 = tpu.matmul %78, %76, %cst_29 {dimension_numbers = #tpu.dot_dimension_numbers<[1], [0], [0], [1], [0, 0, 1, 1], [], []>} : vector<8x8xf32>, vector<8x256xf32>, vector<8x256xf32> -> vector<8x256xf32>
    %80 = arith.addf %67, %79 : vector<8x256xf32>
    %cst_30 = arith.constant 0.000000e+00 : f32
    %81 = vector.broadcast %cst_30 : f32 to vector<8x15xf32>
    %82 = vector.extract_strided_slice %1 {offsets = [0, 15], sizes = [8, 241], strides = [1, 1]} : vector<8x256xf32> to vector<8x241xf32>
    %83 = tpu.concatenate %82, %81 in 1 : vector<8x241xf32>, vector<8x15xf32> -> vector<8x256xf32>
    %c15_i32_31 = arith.constant 15 : i32
    %84 = vector.broadcast %c15_i32_31 : i32 to vector<1x256xi32>
    %85 = arith.cmpi slt, %2, %84 : vector<1x256xi32>
    %c1_i32_32 = arith.constant 1 : i32
    %86 = vector.broadcast %c1_i32_32 : i32 to vector<1x256xi32>
    %87 = arith.cmpi sge, %3, %86 : vector<1x256xi32>
    %88 = arith.andi %85, %87 : vector<1x256xi1>
    %cst_33 = arith.constant 0.000000e+00 : f32
    %89 = vector.broadcast %cst_33 : f32 to vector<8x256xf32>
    %90 = vector.shape_cast %88 : vector<1x256xi1> to vector<1x256xi1>
    %91 = vector.broadcast %90 : vector<1x256xi1> to vector<8x256xi1>
    %92 = arith.select %91, %83, %89 : vector<8x256xi1>, vector<8x256xf32>
    %93 = vector.extract_strided_slice %4 {offsets = [6, 0, 0], sizes = [1, 8, 8], strides = [1, 1, 1]} : vector<9x8x8xf32> to vector<1x8x8xf32>
    %94 = vector.shape_cast %93 : vector<1x8x8xf32> to vector<8x8xf32>
    %cst_34 = arith.constant dense<0.000000e+00> : vector<8x256xf32>
    %95 = tpu.matmul %94, %92, %cst_34 {dimension_numbers = #tpu.dot_dimension_numbers<[1], [0], [0], [1], [0, 0, 1, 1], [], []>} : vector<8x8xf32>, vector<8x256xf32>, vector<8x256xf32> -> vector<8x256xf32>
    %96 = arith.addf %80, %95 : vector<8x256xf32>
    %cst_35 = arith.constant 0.000000e+00 : f32
    %97 = vector.broadcast %cst_35 : f32 to vector<8x16xf32>
    %98 = vector.extract_strided_slice %1 {offsets = [0, 16], sizes = [8, 240], strides = [1, 1]} : vector<8x256xf32> to vector<8x240xf32>
    %99 = tpu.concatenate %98, %97 in 1 : vector<8x240xf32>, vector<8x16xf32> -> vector<8x256xf32>
    %c15_i32_36 = arith.constant 15 : i32
    %100 = vector.broadcast %c15_i32_36 : i32 to vector<1x256xi32>
    %101 = arith.cmpi slt, %2, %100 : vector<1x256xi32>
    %cst_37 = arith.constant 0.000000e+00 : f32
    %102 = vector.broadcast %cst_37 : f32 to vector<8x256xf32>
    %103 = vector.shape_cast %101 : vector<1x256xi1> to vector<1x256xi1>
    %104 = vector.broadcast %103 : vector<1x256xi1> to vector<8x256xi1>
    %105 = arith.select %104, %99, %102 : vector<8x256xi1>, vector<8x256xf32>
    %106 = vector.extract_strided_slice %4 {offsets = [7, 0, 0], sizes = [1, 8, 8], strides = [1, 1, 1]} : vector<9x8x8xf32> to vector<1x8x8xf32>
    %107 = vector.shape_cast %106 : vector<1x8x8xf32> to vector<8x8xf32>
    %cst_38 = arith.constant dense<0.000000e+00> : vector<8x256xf32>
    %108 = tpu.matmul %107, %105, %cst_38 {dimension_numbers = #tpu.dot_dimension_numbers<[1], [0], [0], [1], [0, 0, 1, 1], [], []>} : vector<8x8xf32>, vector<8x256xf32>, vector<8x256xf32> -> vector<8x256xf32>
    %109 = arith.addf %96, %108 : vector<8x256xf32>
    %cst_39 = arith.constant 0.000000e+00 : f32
    %110 = vector.broadcast %cst_39 : f32 to vector<8x17xf32>
    %111 = vector.extract_strided_slice %1 {offsets = [0, 17], sizes = [8, 239], strides = [1, 1]} : vector<8x256xf32> to vector<8x239xf32>
    %112 = tpu.concatenate %111, %110 in 1 : vector<8x239xf32>, vector<8x17xf32> -> vector<8x256xf32>
    %c15_i32_40 = arith.constant 15 : i32
    %113 = vector.broadcast %c15_i32_40 : i32 to vector<1x256xi32>
    %114 = arith.cmpi slt, %2, %113 : vector<1x256xi32>
    %c15_i32_41 = arith.constant 15 : i32
    %115 = vector.broadcast %c15_i32_41 : i32 to vector<1x256xi32>
    %116 = arith.cmpi slt, %3, %115 : vector<1x256xi32>
    %117 = arith.andi %114, %116 : vector<1x256xi1>
    %cst_42 = arith.constant 0.000000e+00 : f32
    %118 = vector.broadcast %cst_42 : f32 to vector<8x256xf32>
    %119 = vector.shape_cast %117 : vector<1x256xi1> to vector<1x256xi1>
    %120 = vector.broadcast %119 : vector<1x256xi1> to vector<8x256xi1>
    %121 = arith.select %120, %112, %118 : vector<8x256xi1>, vector<8x256xf32>
    %122 = vector.extract_strided_slice %4 {offsets = [8, 0, 0], sizes = [1, 8, 8], strides = [1, 1, 1]} : vector<9x8x8xf32> to vector<1x8x8xf32>
    %123 = vector.shape_cast %122 : vector<1x8x8xf32> to vector<8x8xf32>
    %cst_43 = arith.constant dense<0.000000e+00> : vector<8x256xf32>
    %124 = tpu.matmul %123, %121, %cst_43 {dimension_numbers = #tpu.dot_dimension_numbers<[1], [0], [0], [1], [0, 0, 1, 1], [], []>} : vector<8x8xf32>, vector<8x256xf32>, vector<8x256xf32> -> vector<8x256xf32>
    %125 = arith.addf %109, %124 : vector<8x256xf32>
    %c0_44 = arith.constant 0 : index
    %c0_45 = arith.constant 0 : index
    %126 = vector.load %arg3[%c0_44, %c0_45] : memref<8x1xf32, #tpu.memory_space<vmem>>, vector<8x1xf32>
    %127 = vector.broadcast %126 : vector<8x1xf32> to vector<8x256xf32>
    %128 = arith.mulf %125, %127 : vector<8x256xf32>
    %c0_46 = arith.constant 0 : index
    %c0_47 = arith.constant 0 : index
    %129 = vector.load %arg4[%c0_46, %c0_47] : memref<8x1xf32, #tpu.memory_space<vmem>>, vector<8x1xf32>
    %130 = vector.broadcast %129 : vector<8x1xf32> to vector<8x256xf32>
    %131 = arith.addf %128, %130 : vector<8x256xf32>
    %cst_48 = arith.constant 0.000000e+00 : f32
    %132 = vector.broadcast %cst_48 : f32 to vector<8x256xf32>
    %133 = arith.maximumf %131, %132 : vector<8x256xf32>
    %cst_49 = arith.constant dense<0.000000e+00> : vector<8xf32>
    %134 = vector.multi_reduction <add>, %133, %cst_49 [1] : vector<8x256xf32> to vector<8xf32>
    %135 = vector.shape_cast %134 : vector<8xf32> to vector<8x1xf32>
    %cst_50 = arith.constant 3.906250e-03 : f32
    %136 = vector.broadcast %cst_50 : f32 to vector<8x1xf32>
    %137 = arith.mulf %135, %136 : vector<8x1xf32>
    %c0_51 = arith.constant 0 : index
    %c0_52 = arith.constant 0 : index
    %138 = vector.load %arg5[%c0_51, %c0_52] : memref<8x8xf32, #tpu.memory_space<vmem>>, vector<8x8xf32>
    %cst_53 = arith.constant dense<0.000000e+00> : vector<8x1xf32>
    %139 = tpu.matmul %138, %137, %cst_53 {dimension_numbers = #tpu.dot_dimension_numbers<[1], [0], [0], [1], [0, 0, 1, 1], [], []>} : vector<8x8xf32>, vector<8x1xf32>, vector<8x1xf32> -> vector<8x1xf32>
    %140 = arith.negf %139 : vector<8x1xf32>
    %141 = math.exp %140 : vector<8x1xf32>
    %cst_54 = arith.constant 1.000000e+00 : f32
    %142 = vector.broadcast %cst_54 : f32 to vector<8x1xf32>
    %143 = arith.addf %142, %141 : vector<8x1xf32>
    %144 = arith.divf %142, %143 : vector<8x1xf32>
    %145 = math.absf %144 : vector<8x1xf32>
    %cst_55 = arith.constant 2.000000e-01 : f32
    %146 = vector.broadcast %cst_55 : f32 to vector<8x1xf32>
    %147 = arith.cmpf ogt, %145, %146 : vector<8x1xf32>
    %cst_56 = arith.constant 0.000000e+00 : f32
    %148 = vector.broadcast %cst_56 : f32 to vector<8x1xf32>
    %149 = arith.select %147, %144, %148 : vector<8x1xi1>, vector<8x1xf32>
    %150 = vector.broadcast %149 : vector<8x1xf32> to vector<8x256xf32>
    %151 = arith.mulf %133, %150 : vector<8x256xf32>
    %152 = arith.mulf %151, %133 : vector<8x256xf32>
    %cst_57 = arith.constant dense<0.000000e+00> : vector<256xf32>
    %153 = vector.multi_reduction <add>, %133, %cst_57 [0] : vector<8x256xf32> to vector<256xf32>
    %154 = vector.shape_cast %153 : vector<256xf32> to vector<1x256xf32>
    %cst_58 = arith.constant 8.000000e+00 : f32
    %155 = vector.broadcast %cst_58 : f32 to vector<1x256xf32>
    %156 = arith.divf %154, %155 : vector<1x256xf32>
    %cst_59 = arith.constant dense<0xFF800000> : vector<256xf32>
    %157 = vector.multi_reduction <maximumf>, %133, %cst_59 [0] : vector<8x256xf32> to vector<256xf32>
    %158 = vector.shape_cast %157 : vector<256xf32> to vector<1x256xf32>
    %c0_60 = arith.constant 0 : index
    %c0_61 = arith.constant 0 : index
    %159 = vector.load %arg6[%c0_60, %c0_61] : memref<2x9xf32, #tpu.memory_space<vmem>>, vector<2x9xf32>
    %cst_62 = arith.constant 0.000000e+00 : f32
    %160 = vector.broadcast %cst_62 : f32 to vector<1x256xf32>
    %161 = vector.extract_strided_slice %159 {offsets = [0, 0], sizes = [1, 1], strides = [1, 1]} : vector<2x9xf32> to vector<1x1xf32>
    %cst_63 = arith.constant 0.000000e+00 : f32
    %162 = vector.broadcast %cst_63 : f32 to vector<1x34xf32>
    %163 = vector.extract_strided_slice %156 {offsets = [0, 0], sizes = [1, 222], strides = [1, 1]} : vector<1x256xf32> to vector<1x222xf32>
    %164 = tpu.concatenate %162, %163 in 1 : vector<1x34xf32>, vector<1x222xf32> -> vector<1x256xf32>
    %c2_i32 = arith.constant 2 : i32
    %165 = vector.broadcast %c2_i32 : i32 to vector<1x256xi32>
    %166 = arith.cmpi sge, %2, %165 : vector<1x256xi32>
    %c2_i32_64 = arith.constant 2 : i32
    %167 = vector.broadcast %c2_i32_64 : i32 to vector<1x256xi32>
    %168 = arith.cmpi sge, %3, %167 : vector<1x256xi32>
    %169 = arith.andi %166, %168 : vector<1x256xi1>
    %cst_65 = arith.constant 0.000000e+00 : f32
    %170 = vector.broadcast %cst_65 : f32 to vector<1x256xf32>
    %171 = arith.select %169, %164, %170 : vector<1x256xi1>, vector<1x256xf32>
    %172 = vector.broadcast %161 : vector<1x1xf32> to vector<1x256xf32>
    %173 = arith.mulf %171, %172 : vector<1x256xf32>
    %174 = arith.addf %160, %173 : vector<1x256xf32>
    %175 = vector.extract_strided_slice %159 {offsets = [0, 1], sizes = [1, 1], strides = [1, 1]} : vector<2x9xf32> to vector<1x1xf32>
    %cst_66 = arith.constant 0.000000e+00 : f32
    %176 = vector.broadcast %cst_66 : f32 to vector<1x32xf32>
    %177 = vector.extract_strided_slice %156 {offsets = [0, 0], sizes = [1, 224], strides = [1, 1]} : vector<1x256xf32> to vector<1x224xf32>
    %178 = tpu.concatenate %176, %177 in 1 : vector<1x32xf32>, vector<1x224xf32> -> vector<1x256xf32>
    %c2_i32_67 = arith.constant 2 : i32
    %179 = vector.broadcast %c2_i32_67 : i32 to vector<1x256xi32>
    %180 = arith.cmpi sge, %2, %179 : vector<1x256xi32>
    %cst_68 = arith.constant 0.000000e+00 : f32
    %181 = vector.broadcast %cst_68 : f32 to vector<1x256xf32>
    %182 = arith.select %180, %178, %181 : vector<1x256xi1>, vector<1x256xf32>
    %183 = vector.broadcast %175 : vector<1x1xf32> to vector<1x256xf32>
    %184 = arith.mulf %182, %183 : vector<1x256xf32>
    %185 = arith.addf %174, %184 : vector<1x256xf32>
    %186 = vector.extract_strided_slice %159 {offsets = [0, 2], sizes = [1, 1], strides = [1, 1]} : vector<2x9xf32> to vector<1x1xf32>
    %cst_69 = arith.constant 0.000000e+00 : f32
    %187 = vector.broadcast %cst_69 : f32 to vector<1x30xf32>
    %188 = vector.extract_strided_slice %156 {offsets = [0, 0], sizes = [1, 226], strides = [1, 1]} : vector<1x256xf32> to vector<1x226xf32>
    %189 = tpu.concatenate %187, %188 in 1 : vector<1x30xf32>, vector<1x226xf32> -> vector<1x256xf32>
    %c2_i32_70 = arith.constant 2 : i32
    %190 = vector.broadcast %c2_i32_70 : i32 to vector<1x256xi32>
    %191 = arith.cmpi sge, %2, %190 : vector<1x256xi32>
    %c14_i32 = arith.constant 14 : i32
    %192 = vector.broadcast %c14_i32 : i32 to vector<1x256xi32>
    %193 = arith.cmpi slt, %3, %192 : vector<1x256xi32>
    %194 = arith.andi %191, %193 : vector<1x256xi1>
    %cst_71 = arith.constant 0.000000e+00 : f32
    %195 = vector.broadcast %cst_71 : f32 to vector<1x256xf32>
    %196 = arith.select %194, %189, %195 : vector<1x256xi1>, vector<1x256xf32>
    %197 = vector.broadcast %186 : vector<1x1xf32> to vector<1x256xf32>
    %198 = arith.mulf %196, %197 : vector<1x256xf32>
    %199 = arith.addf %185, %198 : vector<1x256xf32>
    %200 = vector.extract_strided_slice %159 {offsets = [0, 3], sizes = [1, 1], strides = [1, 1]} : vector<2x9xf32> to vector<1x1xf32>
    %cst_72 = arith.constant 0.000000e+00 : f32
    %201 = vector.broadcast %cst_72 : f32 to vector<1x2xf32>
    %202 = vector.extract_strided_slice %156 {offsets = [0, 0], sizes = [1, 254], strides = [1, 1]} : vector<1x256xf32> to vector<1x254xf32>
    %203 = tpu.concatenate %201, %202 in 1 : vector<1x2xf32>, vector<1x254xf32> -> vector<1x256xf32>
    %c2_i32_73 = arith.constant 2 : i32
    %204 = vector.broadcast %c2_i32_73 : i32 to vector<1x256xi32>
    %205 = arith.cmpi sge, %3, %204 : vector<1x256xi32>
    %cst_74 = arith.constant 0.000000e+00 : f32
    %206 = vector.broadcast %cst_74 : f32 to vector<1x256xf32>
    %207 = arith.select %205, %203, %206 : vector<1x256xi1>, vector<1x256xf32>
    %208 = vector.broadcast %200 : vector<1x1xf32> to vector<1x256xf32>
    %209 = arith.mulf %207, %208 : vector<1x256xf32>
    %210 = arith.addf %199, %209 : vector<1x256xf32>
    %211 = vector.extract_strided_slice %159 {offsets = [0, 4], sizes = [1, 1], strides = [1, 1]} : vector<2x9xf32> to vector<1x1xf32>
    %212 = vector.broadcast %211 : vector<1x1xf32> to vector<1x256xf32>
    %213 = arith.mulf %156, %212 : vector<1x256xf32>
    %214 = arith.addf %210, %213 : vector<1x256xf32>
    %215 = vector.extract_strided_slice %159 {offsets = [0, 5], sizes = [1, 1], strides = [1, 1]} : vector<2x9xf32> to vector<1x1xf32>
    %cst_75 = arith.constant 0.000000e+00 : f32
    %216 = vector.broadcast %cst_75 : f32 to vector<1x2xf32>
    %217 = vector.extract_strided_slice %156 {offsets = [0, 2], sizes = [1, 254], strides = [1, 1]} : vector<1x256xf32> to vector<1x254xf32>
    %218 = tpu.concatenate %217, %216 in 1 : vector<1x254xf32>, vector<1x2xf32> -> vector<1x256xf32>
    %c14_i32_76 = arith.constant 14 : i32
    %219 = vector.broadcast %c14_i32_76 : i32 to vector<1x256xi32>
    %220 = arith.cmpi slt, %3, %219 : vector<1x256xi32>
    %cst_77 = arith.constant 0.000000e+00 : f32
    %221 = vector.broadcast %cst_77 : f32 to vector<1x256xf32>
    %222 = arith.select %220, %218, %221 : vector<1x256xi1>, vector<1x256xf32>
    %223 = vector.broadcast %215 : vector<1x1xf32> to vector<1x256xf32>
    %224 = arith.mulf %222, %223 : vector<1x256xf32>
    %225 = arith.addf %214, %224 : vector<1x256xf32>
    %226 = vector.extract_strided_slice %159 {offsets = [0, 6], sizes = [1, 1], strides = [1, 1]} : vector<2x9xf32> to vector<1x1xf32>
    %cst_78 = arith.constant 0.000000e+00 : f32
    %227 = vector.broadcast %cst_78 : f32 to vector<1x30xf32>
    %228 = vector.extract_strided_slice %156 {offsets = [0, 30], sizes = [1, 226], strides = [1, 1]} : vector<1x256xf32> to vector<1x226xf32>
    %229 = tpu.concatenate %228, %227 in 1 : vector<1x226xf32>, vector<1x30xf32> -> vector<1x256xf32>
    %c14_i32_79 = arith.constant 14 : i32
    %230 = vector.broadcast %c14_i32_79 : i32 to vector<1x256xi32>
    %231 = arith.cmpi slt, %2, %230 : vector<1x256xi32>
    %c2_i32_80 = arith.constant 2 : i32
    %232 = vector.broadcast %c2_i32_80 : i32 to vector<1x256xi32>
    %233 = arith.cmpi sge, %3, %232 : vector<1x256xi32>
    %234 = arith.andi %231, %233 : vector<1x256xi1>
    %cst_81 = arith.constant 0.000000e+00 : f32
    %235 = vector.broadcast %cst_81 : f32 to vector<1x256xf32>
    %236 = arith.select %234, %229, %235 : vector<1x256xi1>, vector<1x256xf32>
    %237 = vector.broadcast %226 : vector<1x1xf32> to vector<1x256xf32>
    %238 = arith.mulf %236, %237 : vector<1x256xf32>
    %239 = arith.addf %225, %238 : vector<1x256xf32>
    %240 = vector.extract_strided_slice %159 {offsets = [0, 7], sizes = [1, 1], strides = [1, 1]} : vector<2x9xf32> to vector<1x1xf32>
    %cst_82 = arith.constant 0.000000e+00 : f32
    %241 = vector.broadcast %cst_82 : f32 to vector<1x32xf32>
    %242 = vector.extract_strided_slice %156 {offsets = [0, 32], sizes = [1, 224], strides = [1, 1]} : vector<1x256xf32> to vector<1x224xf32>
    %243 = tpu.concatenate %242, %241 in 1 : vector<1x224xf32>, vector<1x32xf32> -> vector<1x256xf32>
    %c14_i32_83 = arith.constant 14 : i32
    %244 = vector.broadcast %c14_i32_83 : i32 to vector<1x256xi32>
    %245 = arith.cmpi slt, %2, %244 : vector<1x256xi32>
    %cst_84 = arith.constant 0.000000e+00 : f32
    %246 = vector.broadcast %cst_84 : f32 to vector<1x256xf32>
    %247 = arith.select %245, %243, %246 : vector<1x256xi1>, vector<1x256xf32>
    %248 = vector.broadcast %240 : vector<1x1xf32> to vector<1x256xf32>
    %249 = arith.mulf %247, %248 : vector<1x256xf32>
    %250 = arith.addf %239, %249 : vector<1x256xf32>
    %251 = vector.extract_strided_slice %159 {offsets = [0, 8], sizes = [1, 1], strides = [1, 1]} : vector<2x9xf32> to vector<1x1xf32>
    %cst_85 = arith.constant 0.000000e+00 : f32
    %252 = vector.broadcast %cst_85 : f32 to vector<1x34xf32>
    %253 = vector.extract_strided_slice %156 {offsets = [0, 34], sizes = [1, 222], strides = [1, 1]} : vector<1x256xf32> to vector<1x222xf32>
    %254 = tpu.concatenate %253, %252 in 1 : vector<1x222xf32>, vector<1x34xf32> -> vector<1x256xf32>
    %c14_i32_86 = arith.constant 14 : i32
    %255 = vector.broadcast %c14_i32_86 : i32 to vector<1x256xi32>
    %256 = arith.cmpi slt, %2, %255 : vector<1x256xi32>
    %c14_i32_87 = arith.constant 14 : i32
    %257 = vector.broadcast %c14_i32_87 : i32 to vector<1x256xi32>
    %258 = arith.cmpi slt, %3, %257 : vector<1x256xi32>
    %259 = arith.andi %256, %258 : vector<1x256xi1>
    %cst_88 = arith.constant 0.000000e+00 : f32
    %260 = vector.broadcast %cst_88 : f32 to vector<1x256xf32>
    %261 = arith.select %259, %254, %260 : vector<1x256xi1>, vector<1x256xf32>
    %262 = vector.broadcast %251 : vector<1x1xf32> to vector<1x256xf32>
    %263 = arith.mulf %261, %262 : vector<1x256xf32>
    %264 = arith.addf %250, %263 : vector<1x256xf32>
    %265 = vector.extract_strided_slice %159 {offsets = [1, 0], sizes = [1, 1], strides = [1, 1]} : vector<2x9xf32> to vector<1x1xf32>
    %cst_89 = arith.constant 0.000000e+00 : f32
    %266 = vector.broadcast %cst_89 : f32 to vector<1x34xf32>
    %267 = vector.extract_strided_slice %158 {offsets = [0, 0], sizes = [1, 222], strides = [1, 1]} : vector<1x256xf32> to vector<1x222xf32>
    %268 = tpu.concatenate %266, %267 in 1 : vector<1x34xf32>, vector<1x222xf32> -> vector<1x256xf32>
    %c2_i32_90 = arith.constant 2 : i32
    %269 = vector.broadcast %c2_i32_90 : i32 to vector<1x256xi32>
    %270 = arith.cmpi sge, %2, %269 : vector<1x256xi32>
    %c2_i32_91 = arith.constant 2 : i32
    %271 = vector.broadcast %c2_i32_91 : i32 to vector<1x256xi32>
    %272 = arith.cmpi sge, %3, %271 : vector<1x256xi32>
    %273 = arith.andi %270, %272 : vector<1x256xi1>
    %cst_92 = arith.constant 0.000000e+00 : f32
    %274 = vector.broadcast %cst_92 : f32 to vector<1x256xf32>
    %275 = arith.select %273, %268, %274 : vector<1x256xi1>, vector<1x256xf32>
    %276 = vector.broadcast %265 : vector<1x1xf32> to vector<1x256xf32>
    %277 = arith.mulf %275, %276 : vector<1x256xf32>
    %278 = arith.addf %264, %277 : vector<1x256xf32>
    %279 = vector.extract_strided_slice %159 {offsets = [1, 1], sizes = [1, 1], strides = [1, 1]} : vector<2x9xf32> to vector<1x1xf32>
    %cst_93 = arith.constant 0.000000e+00 : f32
    %280 = vector.broadcast %cst_93 : f32 to vector<1x32xf32>
    %281 = vector.extract_strided_slice %158 {offsets = [0, 0], sizes = [1, 224], strides = [1, 1]} : vector<1x256xf32> to vector<1x224xf32>
    %282 = tpu.concatenate %280, %281 in 1 : vector<1x32xf32>, vector<1x224xf32> -> vector<1x256xf32>
    %c2_i32_94 = arith.constant 2 : i32
    %283 = vector.broadcast %c2_i32_94 : i32 to vector<1x256xi32>
    %284 = arith.cmpi sge, %2, %283 : vector<1x256xi32>
    %cst_95 = arith.constant 0.000000e+00 : f32
    %285 = vector.broadcast %cst_95 : f32 to vector<1x256xf32>
    %286 = arith.select %284, %282, %285 : vector<1x256xi1>, vector<1x256xf32>
    %287 = vector.broadcast %279 : vector<1x1xf32> to vector<1x256xf32>
    %288 = arith.mulf %286, %287 : vector<1x256xf32>
    %289 = arith.addf %278, %288 : vector<1x256xf32>
    %290 = vector.extract_strided_slice %159 {offsets = [1, 2], sizes = [1, 1], strides = [1, 1]} : vector<2x9xf32> to vector<1x1xf32>
    %cst_96 = arith.constant 0.000000e+00 : f32
    %291 = vector.broadcast %cst_96 : f32 to vector<1x30xf32>
    %292 = vector.extract_strided_slice %158 {offsets = [0, 0], sizes = [1, 226], strides = [1, 1]} : vector<1x256xf32> to vector<1x226xf32>
    %293 = tpu.concatenate %291, %292 in 1 : vector<1x30xf32>, vector<1x226xf32> -> vector<1x256xf32>
    %c2_i32_97 = arith.constant 2 : i32
    %294 = vector.broadcast %c2_i32_97 : i32 to vector<1x256xi32>
    %295 = arith.cmpi sge, %2, %294 : vector<1x256xi32>
    %c14_i32_98 = arith.constant 14 : i32
    %296 = vector.broadcast %c14_i32_98 : i32 to vector<1x256xi32>
    %297 = arith.cmpi slt, %3, %296 : vector<1x256xi32>
    %298 = arith.andi %295, %297 : vector<1x256xi1>
    %cst_99 = arith.constant 0.000000e+00 : f32
    %299 = vector.broadcast %cst_99 : f32 to vector<1x256xf32>
    %300 = arith.select %298, %293, %299 : vector<1x256xi1>, vector<1x256xf32>
    %301 = vector.broadcast %290 : vector<1x1xf32> to vector<1x256xf32>
    %302 = arith.mulf %300, %301 : vector<1x256xf32>
    %303 = arith.addf %289, %302 : vector<1x256xf32>
    %304 = vector.extract_strided_slice %159 {offsets = [1, 3], sizes = [1, 1], strides = [1, 1]} : vector<2x9xf32> to vector<1x1xf32>
    %cst_100 = arith.constant 0.000000e+00 : f32
    %305 = vector.broadcast %cst_100 : f32 to vector<1x2xf32>
    %306 = vector.extract_strided_slice %158 {offsets = [0, 0], sizes = [1, 254], strides = [1, 1]} : vector<1x256xf32> to vector<1x254xf32>
    %307 = tpu.concatenate %305, %306 in 1 : vector<1x2xf32>, vector<1x254xf32> -> vector<1x256xf32>
    %c2_i32_101 = arith.constant 2 : i32
    %308 = vector.broadcast %c2_i32_101 : i32 to vector<1x256xi32>
    %309 = arith.cmpi sge, %3, %308 : vector<1x256xi32>
    %cst_102 = arith.constant 0.000000e+00 : f32
    %310 = vector.broadcast %cst_102 : f32 to vector<1x256xf32>
    %311 = arith.select %309, %307, %310 : vector<1x256xi1>, vector<1x256xf32>
    %312 = vector.broadcast %304 : vector<1x1xf32> to vector<1x256xf32>
    %313 = arith.mulf %311, %312 : vector<1x256xf32>
    %314 = arith.addf %303, %313 : vector<1x256xf32>
    %315 = vector.extract_strided_slice %159 {offsets = [1, 4], sizes = [1, 1], strides = [1, 1]} : vector<2x9xf32> to vector<1x1xf32>
    %316 = vector.broadcast %315 : vector<1x1xf32> to vector<1x256xf32>
    %317 = arith.mulf %158, %316 : vector<1x256xf32>
    %318 = arith.addf %314, %317 : vector<1x256xf32>
    %319 = vector.extract_strided_slice %159 {offsets = [1, 5], sizes = [1, 1], strides = [1, 1]} : vector<2x9xf32> to vector<1x1xf32>
    %cst_103 = arith.constant 0.000000e+00 : f32
    %320 = vector.broadcast %cst_103 : f32 to vector<1x2xf32>
    %321 = vector.extract_strided_slice %158 {offsets = [0, 2], sizes = [1, 254], strides = [1, 1]} : vector<1x256xf32> to vector<1x254xf32>
    %322 = tpu.concatenate %321, %320 in 1 : vector<1x254xf32>, vector<1x2xf32> -> vector<1x256xf32>
    %c14_i32_104 = arith.constant 14 : i32
    %323 = vector.broadcast %c14_i32_104 : i32 to vector<1x256xi32>
    %324 = arith.cmpi slt, %3, %323 : vector<1x256xi32>
    %cst_105 = arith.constant 0.000000e+00 : f32
    %325 = vector.broadcast %cst_105 : f32 to vector<1x256xf32>
    %326 = arith.select %324, %322, %325 : vector<1x256xi1>, vector<1x256xf32>
    %327 = vector.broadcast %319 : vector<1x1xf32> to vector<1x256xf32>
    %328 = arith.mulf %326, %327 : vector<1x256xf32>
    %329 = arith.addf %318, %328 : vector<1x256xf32>
    %330 = vector.extract_strided_slice %159 {offsets = [1, 6], sizes = [1, 1], strides = [1, 1]} : vector<2x9xf32> to vector<1x1xf32>
    %cst_106 = arith.constant 0.000000e+00 : f32
    %331 = vector.broadcast %cst_106 : f32 to vector<1x30xf32>
    %332 = vector.extract_strided_slice %158 {offsets = [0, 30], sizes = [1, 226], strides = [1, 1]} : vector<1x256xf32> to vector<1x226xf32>
    %333 = tpu.concatenate %332, %331 in 1 : vector<1x226xf32>, vector<1x30xf32> -> vector<1x256xf32>
    %c14_i32_107 = arith.constant 14 : i32
    %334 = vector.broadcast %c14_i32_107 : i32 to vector<1x256xi32>
    %335 = arith.cmpi slt, %2, %334 : vector<1x256xi32>
    %c2_i32_108 = arith.constant 2 : i32
    %336 = vector.broadcast %c2_i32_108 : i32 to vector<1x256xi32>
    %337 = arith.cmpi sge, %3, %336 : vector<1x256xi32>
    %338 = arith.andi %335, %337 : vector<1x256xi1>
    %cst_109 = arith.constant 0.000000e+00 : f32
    %339 = vector.broadcast %cst_109 : f32 to vector<1x256xf32>
    %340 = arith.select %338, %333, %339 : vector<1x256xi1>, vector<1x256xf32>
    %341 = vector.broadcast %330 : vector<1x1xf32> to vector<1x256xf32>
    %342 = arith.mulf %340, %341 : vector<1x256xf32>
    %343 = arith.addf %329, %342 : vector<1x256xf32>
    %344 = vector.extract_strided_slice %159 {offsets = [1, 7], sizes = [1, 1], strides = [1, 1]} : vector<2x9xf32> to vector<1x1xf32>
    %cst_110 = arith.constant 0.000000e+00 : f32
    %345 = vector.broadcast %cst_110 : f32 to vector<1x32xf32>
    %346 = vector.extract_strided_slice %158 {offsets = [0, 32], sizes = [1, 224], strides = [1, 1]} : vector<1x256xf32> to vector<1x224xf32>
    %347 = tpu.concatenate %346, %345 in 1 : vector<1x224xf32>, vector<1x32xf32> -> vector<1x256xf32>
    %c14_i32_111 = arith.constant 14 : i32
    %348 = vector.broadcast %c14_i32_111 : i32 to vector<1x256xi32>
    %349 = arith.cmpi slt, %2, %348 : vector<1x256xi32>
    %cst_112 = arith.constant 0.000000e+00 : f32
    %350 = vector.broadcast %cst_112 : f32 to vector<1x256xf32>
    %351 = arith.select %349, %347, %350 : vector<1x256xi1>, vector<1x256xf32>
    %352 = vector.broadcast %344 : vector<1x1xf32> to vector<1x256xf32>
    %353 = arith.mulf %351, %352 : vector<1x256xf32>
    %354 = arith.addf %343, %353 : vector<1x256xf32>
    %355 = vector.extract_strided_slice %159 {offsets = [1, 8], sizes = [1, 1], strides = [1, 1]} : vector<2x9xf32> to vector<1x1xf32>
    %cst_113 = arith.constant 0.000000e+00 : f32
    %356 = vector.broadcast %cst_113 : f32 to vector<1x34xf32>
    %357 = vector.extract_strided_slice %158 {offsets = [0, 34], sizes = [1, 222], strides = [1, 1]} : vector<1x256xf32> to vector<1x222xf32>
    %358 = tpu.concatenate %357, %356 in 1 : vector<1x222xf32>, vector<1x34xf32> -> vector<1x256xf32>
    %c14_i32_114 = arith.constant 14 : i32
    %359 = vector.broadcast %c14_i32_114 : i32 to vector<1x256xi32>
    %360 = arith.cmpi slt, %2, %359 : vector<1x256xi32>
    %c14_i32_115 = arith.constant 14 : i32
    %361 = vector.broadcast %c14_i32_115 : i32 to vector<1x256xi32>
    %362 = arith.cmpi slt, %3, %361 : vector<1x256xi32>
    %363 = arith.andi %360, %362 : vector<1x256xi1>
    %cst_116 = arith.constant 0.000000e+00 : f32
    %364 = vector.broadcast %cst_116 : f32 to vector<1x256xf32>
    %365 = arith.select %363, %358, %364 : vector<1x256xi1>, vector<1x256xf32>
    %366 = vector.broadcast %355 : vector<1x1xf32> to vector<1x256xf32>
    %367 = arith.mulf %365, %366 : vector<1x256xf32>
    %368 = arith.addf %354, %367 : vector<1x256xf32>
    %c0_117 = arith.constant 0 : index
    %c0_118 = arith.constant 0 : index
    %369 = vector.load %arg7[%c0_117, %c0_118] : memref<1x1xf32, #tpu.memory_space<vmem>>, vector<1x1xf32>
    %370 = vector.broadcast %369 : vector<1x1xf32> to vector<1x256xf32>
    %371 = arith.addf %368, %370 : vector<1x256xf32>
    %372 = arith.negf %371 : vector<1x256xf32>
    %373 = math.exp %372 : vector<1x256xf32>
    %cst_119 = arith.constant 1.000000e+00 : f32
    %374 = vector.broadcast %cst_119 : f32 to vector<1x256xf32>
    %375 = arith.addf %374, %373 : vector<1x256xf32>
    %376 = arith.divf %374, %375 : vector<1x256xf32>
    %377 = math.absf %376 : vector<1x256xf32>
    %cst_120 = arith.constant 2.000000e-01 : f32
    %378 = vector.broadcast %cst_120 : f32 to vector<1x256xf32>
    %379 = arith.cmpf ogt, %377, %378 : vector<1x256xf32>
    %cst_121 = arith.constant 0.000000e+00 : f32
    %380 = vector.broadcast %cst_121 : f32 to vector<1x256xf32>
    %381 = arith.select %379, %376, %380 : vector<1x256xi1>, vector<1x256xf32>
    %382 = vector.broadcast %381 : vector<1x256xf32> to vector<8x256xf32>
    %383 = arith.mulf %382, %133 : vector<8x256xf32>
    %384 = arith.addf %152, %1 : vector<8x256xf32>
    %cst_122 = arith.constant 0.000000e+00 : f32
    %385 = vector.broadcast %cst_122 : f32 to vector<8x256xf32>
    %386 = arith.maximumf %384, %385 : vector<8x256xf32>
    %c0_123 = arith.constant 0 : index
    %c0_124 = arith.constant 0 : index
    %c0_125 = arith.constant 0 : index
    %c0_126 = arith.constant 0 : index
    %387 = vector.load %arg10[%c0_123, %c0_124, %c0_125, %c0_126] : memref<1x2x8x256xf32, #tpu.memory_space<vmem>>, vector<1x1x8x256xf32>
    %388 = vector.shape_cast %387 : vector<1x1x8x256xf32> to vector<8x256xf32>
    %389 = vector.shape_cast %386 : vector<8x256xf32> to vector<1x1x8x256xf32>
    tpu.vector_store %arg10[%c0_123, %c0_124, %c0_125, %c0_126], %389 {strides = array<i32>} : memref<1x2x8x256xf32, #tpu.memory_space<vmem>>, vector<1x1x8x256xf32>,
    %390 = arith.addf %383, %1 : vector<8x256xf32>
    %cst_127 = arith.constant 0.000000e+00 : f32
    %391 = vector.broadcast %cst_127 : f32 to vector<8x256xf32>
    %392 = arith.maximumf %390, %391 : vector<8x256xf32>
    %c0_128 = arith.constant 0 : index
    %c1 = arith.constant 1 : index
    %c0_129 = arith.constant 0 : index
    %c0_130 = arith.constant 0 : index
    %393 = vector.load %arg10[%c0_128, %c1, %c0_129, %c0_130] : memref<1x2x8x256xf32, #tpu.memory_space<vmem>>, vector<1x1x8x256xf32>
    %394 = vector.shape_cast %393 : vector<1x1x8x256xf32> to vector<8x256xf32>
    %395 = vector.shape_cast %392 : vector<8x256xf32> to vector<1x1x8x256xf32>
    tpu.vector_store %arg10[%c0_128, %c1, %c0_129, %c0_130], %395 {strides = array<i32>} : memref<1x2x8x256xf32, #tpu.memory_space<vmem>>, vector<1x1x8x256xf32>,
    return
  }
  func.func @transform_0(%arg0: i32) -> (i32, i32, i32) {
    %c0_i32 = arith.constant 0 : i32
    %c0_i32_0 = arith.constant 0 : i32
    %c0_i32_1 = arith.constant 0 : i32
    return %arg0, %c0_i32, %c0_i32_0 : i32, i32, i32
  }
  func.func @transform_1(%arg0: i32) -> (i32, i32, i32) {
    %c0_i32 = arith.constant 0 : i32
    %c0_i32_0 = arith.constant 0 : i32
    %c0_i32_1 = arith.constant 0 : i32
    %c0_i32_2 = arith.constant 0 : i32
    return %c0_i32, %c0_i32_0, %c0_i32_1 : i32, i32, i32
  }
  func.func @transform_2(%arg0: i32) -> (i32, i32) {
    %c0_i32 = arith.constant 0 : i32
    %c0_i32_0 = arith.constant 0 : i32
    %c0_i32_1 = arith.constant 0 : i32
    return %c0_i32, %c0_i32_0 : i32, i32
  }
  func.func @transform_3(%arg0: i32) -> (i32, i32) {
    %c0_i32 = arith.constant 0 : i32
    %c0_i32_0 = arith.constant 0 : i32
    %c0_i32_1 = arith.constant 0 : i32
    return %c0_i32, %c0_i32_0 : i32, i32
  }
  func.func @transform_4(%arg0: i32) -> (i32, i32) {
    %c0_i32 = arith.constant 0 : i32
    %c0_i32_0 = arith.constant 0 : i32
    %c0_i32_1 = arith.constant 0 : i32
    return %c0_i32, %c0_i32_0 : i32, i32
  }
  func.func @transform_5(%arg0: i32) -> (i32, i32) {
    %c0_i32 = arith.constant 0 : i32
    %c0_i32_0 = arith.constant 0 : i32
    %c0_i32_1 = arith.constant 0 : i32
    return %c0_i32, %c0_i32_0 : i32, i32
  }
  func.func @transform_6(%arg0: i32) -> (i32, i32) {
    %c0_i32 = arith.constant 0 : i32
    %c0_i32_0 = arith.constant 0 : i32
    %c0_i32_1 = arith.constant 0 : i32
    return %c0_i32, %c0_i32_0 : i32, i32
  }
  func.func @transform_7(%arg0: i32) -> (i32, i32) {
    %c0_i32 = arith.constant 0 : i32
    %c0_i32_0 = arith.constant 0 : i32
    %c0_i32_1 = arith.constant 0 : i32
    return %c0_i32, %c0_i32_0 : i32, i32
  }
  func.func @transform_8(%arg0: i32) -> (i32, i32) {
    %c0_i32 = arith.constant 0 : i32
    %c0_i32_0 = arith.constant 0 : i32
    %c0_i32_1 = arith.constant 0 : i32
    return %c0_i32, %c0_i32_0 : i32, i32
  }
  func.func @transform_9(%arg0: i32) -> (i32, i32, i32, i32) {
    %c0_i32 = arith.constant 0 : i32
    %c0_i32_0 = arith.constant 0 : i32
    %c0_i32_1 = arith.constant 0 : i32
    %c0_i32_2 = arith.constant 0 : i32
    return %arg0, %c0_i32, %c0_i32_0, %c0_i32_1 : i32, i32, i32, i32
  }
}

</mosaic_0001>

<llo_original>
// kernel: tpu_custom_call.1
$region0: #{tpu_custom_call.1}
  #allocation0 [shape = 'u32[]', space=smem, size = 0x4, offset = 0x4, fixed_abs, tag = 'smem constant byte address 0x4 - core index']
  #allocation1 [shape = 'u32[144,128]{1,0:T(1,128)}', space=vmem, size = 0x12000, scoped, tag = 'internal scratch']
  #allocation2 [shape = 'f32[1,1]{1,0:T(1,128)S(1)}', space=vmem, size = 0x200, scoped, tag = 'scoped memory for tpu_custom_call.1']
  %s0 = inlined_call_operand.vmem [shape: f32[2,8,256], index: 0, kind: input, shape index: {}]
  %s1 = inlined_call_operand.vmem [shape: f32[9,8,8], index: 1, kind: input, shape index: {}]
  %s2 = inlined_call_operand.vmem [shape: f32[8,1], index: 2, kind: input, shape index: {}]
  %s3 = inlined_call_operand.vmem [shape: f32[8,1], index: 3, kind: input, shape index: {}]
  %s4 = inlined_call_operand.vmem [shape: f32[8,8], index: 4, kind: input, shape index: {}]
  %s5 = inlined_call_operand.vmem [shape: f32[2,9], index: 5, kind: input, shape index: {}]
  %s6 = inlined_call_operand.<no memory space> [shape: f32[1,1], index: 6, kind: input, shape index: {}]
  %s7 = inlined_call_operand.vmem [shape: s32[1,256], index: 7, kind: input, shape index: {}]
  %s8 = inlined_call_operand.vmem [shape: s32[1,256], index: 8, kind: input, shape index: {}]
  %s9 = inlined_call_operand.hbm [shape: f32[2,2,8,256], index: 9, kind: output, shape index: {}]
  %s10 = sld [smem:[#allocation0]]
  $region69: #{tpu_custom_call.1} parent=0
    _
  %s12 = ssub.s32 1, %s10
  %s13 = scalar_select 0, %s12, %s10
  %v14 = vstv %s6
  %15 = vst [vmem:[#allocation2] sm:$0x1] %v14
  $region1: #{tpu_custom_call.1} parent=0
    #allocation3 [shape = 'u8[32768]{0}', space=vmem, size = 0x8000, scoped, tag = 'output window, operand 0']
    #allocation4 [shape = 's32[2]{0}', space=sflag, size = 0x8, scoped, tag = 'scoped memory for tpu_custom_call.1']
    %16 = vsyncpa [#allocation4], 0
    %s17 = scalar_lea.sflag [#allocation4], 1
    %18 = vsyncpa %s17, 0
    loop: start=0, step=1, limit=4
    $region2: #{tpu_custom_call.1} parent=1 // loop_pre_header
      _
    $region3: #{tpu_custom_call.1} parent=1 // loop_header
      %s20 = sphi 0, %s24
      %p21 = scmp.ge.s32.totalorder %s20, 4
      %s30 = sphi 0, %s32
      %s33 = sphi 0, %s30
      %s34 = sphi 0, %s33
      %s50 = sphi 0, %s34
      %s54 = sphi 0, %s54
      %s56 = sphi 0, %s54
      %s57 = sphi 0, %s56
      %s71 = sphi 0, %s57
      %s75 = sphi 0, %s75
      %s77 = sphi 0, %s75
      %s78 = sphi 0, %s77
      %s92 = sphi 0, %s78
      %s96 = sphi 0, %s96
      %s98 = sphi 0, %s96
      %s99 = sphi 0, %s98
      %s113 = sphi 0, %s99
      %s117 = sphi 0, %s117
      %s119 = sphi 0, %s117
      %s120 = sphi 0, %s119
      %s134 = sphi 0, %s120
      %s138 = sphi 0, %s138
      %s140 = sphi 0, %s138
      %s141 = sphi 0, %s140
      %s155 = sphi 0, %s141
      %s159 = sphi 0, %s159
      %s161 = sphi 0, %s159
      %s162 = sphi 0, %s161
      %s176 = sphi 0, %s162
      %s180 = sphi 0, %s180
      %s182 = sphi 0, %s180
      %s183 = sphi 0, %s182
      %s197 = sphi 0, %s183
      %s201 = sphi 0, %s201
      %s203 = sphi 0, %s201
      %s204 = sphi 0, %s203
      %s218 = sphi 0, %s204
      %s224 = sphi 0, %s226
      %s227 = sphi 0, %s224
      %s228 = sphi 0, %s227
      %s244 = sphi 0, %s228
    $region4: #{tpu_custom_call.1} parent=1 // loop_header_branch
      %23 = sbr.rel (%p21) target = $region8
    $region5: #{tpu_custom_call.1} parent=1 // loop_body
      %s25 = ssub.s32 %s20, 1
      %s26 = ssub.s32 %s20, 2
      %s27 = sadd.s32 %s20, 1
      %s28 = ssub.s32 %s20, %s27
      %p29 = scmp.eq.s32.totalorder %s28, 0
      %s31 = sadd.s32 %s30, 1
      %s32 = scalar_select %p29, %s30, %s31
      %p35 = pneg %p29
      %p36 = scmp.eq.s32.totalorder %s20, 1
      %p37 = por %p35, %p36
      %p38 = scmp.ne.s32.totalorder %s30, %s33
      %p39 = scmp.eq.s32.totalorder %s20, 0
      %p40 = por %p38, %p39
      %p41 = scmp.ne.s32.totalorder %s30, %s33
      %p42 = scmp.eq.s32.totalorder %s25, 1
      %p43 = por %p41, %p42
      %p44 = scmp.ne.s32.totalorder %s33, %s34
      %p45 = scmp.eq.s32.totalorder %s25, 0
      %p46 = por %p44, %p45
      %p47 = scmp.ne.s32.totalorder %s33, %s34
      %p48 = scmp.eq.s32.totalorder %s26, 1
      %p49 = por %p47, %p48
      %p51 = scmp.ne.s32.totalorder %s34, %s50
      %p52 = scmp.eq.s32.totalorder %s26, 0
      %p53 = por %p51, %p52
      %s55 = sadd.s32 %s54, 1
      %p58 = scmp.eq.s32.totalorder %s20, 1
      %p59 = scmp.ne.s32.totalorder %s54, %s56
      %p60 = scmp.eq.s32.totalorder %s20, 0
      %p61 = por %p59, %p60
      %p62 = scmp.ne.s32.totalorder %s54, %s56
      %p63 = scmp.eq.s32.totalorder %s25, 1
      %p64 = por %p62, %p63
      %p65 = scmp.ne.s32.totalorder %s56, %s57
      %p66 = scmp.eq.s32.totalorder %s25, 0
      %p67 = por %p65, %p66
      %p68 = scmp.ne.s32.totalorder %s56, %s57
      %p69 = scmp.eq.s32.totalorder %s26, 1
      %p70 = por %p68, %p69
      %p72 = scmp.ne.s32.totalorder %s57, %s71
      %p73 = scmp.eq.s32.totalorder %s26, 0
      %p74 = por %p72, %p73
      %s76 = sadd.s32 %s75, 1
      %p79 = scmp.eq.s32.totalorder %s20, 1
      %p80 = scmp.ne.s32.totalorder %s75, %s77
      %p81 = scmp.eq.s32.totalorder %s20, 0
      %p82 = por %p80, %p81
      %p83 = scmp.ne.s32.totalorder %s75, %s77
      %p84 = scmp.eq.s32.totalorder %s25, 1
      %p85 = por %p83, %p84
      %p86 = scmp.ne.s32.totalorder %s77, %s78
      %p87 = scmp.eq.s32.totalorder %s25, 0
      %p88 = por %p86, %p87
      %p89 = scmp.ne.s32.totalorder %s77, %s78
      %p90 = scmp.eq.s32.totalorder %s26, 1
      %p91 = por %p89, %p90
      %p93 = scmp.ne.s32.totalorder %s78, %s92
      %p94 = scmp.eq.s32.totalorder %s26, 0
      %p95 = por %p93, %p94
      %s97 = sadd.s32 %s96, 1
      %p100 = scmp.eq.s32.totalorder %s20, 1
      %p101 = scmp.ne.s32.totalorder %s96, %s98
      %p102 = scmp.eq.s32.totalorder %s20, 0
      %p103 = por %p101, %p102
      %p104 = scmp.ne.s32.totalorder %s96, %s98
      %p105 = scmp.eq.s32.totalorder %s25, 1
      %p106 = por %p104, %p105
      %p107 = scmp.ne.s32.totalorder %s98, %s99
      %p108 = scmp.eq.s32.totalorder %s25, 0
      %p109 = por %p107, %p108
      %p110 = scmp.ne.s32.totalorder %s98, %s99
      %p111 = scmp.eq.s32.totalorder %s26, 1
      %p112 = por %p110, %p111
      %p114 = scmp.ne.s32.totalorder %s99, %s113
      %p115 = scmp.eq.s32.totalorder %s26, 0
      %p116 = por %p114, %p115
      %s118 = sadd.s32 %s117, 1
      %p121 = scmp.eq.s32.totalorder %s20, 1
      %p122 = scmp.ne.s32.totalorder %s117, %s119
      %p123 = scmp.eq.s32.totalorder %s20, 0
      %p124 = por %p122, %p123
      %p125 = scmp.ne.s32.totalorder %s117, %s119
      %p126 = scmp.eq.s32.totalorder %s25, 1
      %p127 = por %p125, %p126
      %p128 = scmp.ne.s32.totalorder %s119, %s120
      %p129 = scmp.eq.s32.totalorder %s25, 0
      %p130 = por %p128, %p129
      %p131 = scmp.ne.s32.totalorder %s119, %s120
      %p132 = scmp.eq.s32.totalorder %s26, 1
      %p133 = por %p131, %p132
      %p135 = scmp.ne.s32.totalorder %s120, %s134
      %p136 = scmp.eq.s32.totalorder %s26, 0
      %p137 = por %p135, %p136
      %s139 = sadd.s32 %s138, 1
      %p142 = scmp.eq.s32.totalorder %s20, 1
      %p143 = scmp.ne.s32.totalorder %s138, %s140
      %p144 = scmp.eq.s32.totalorder %s20, 0
      %p145 = por %p143, %p144
      %p146 = scmp.ne.s32.totalorder %s138, %s140
      %p147 = scmp.eq.s32.totalorder %s25, 1
      %p148 = por %p146, %p147
      %p149 = scmp.ne.s32.totalorder %s140, %s141
      %p150 = scmp.eq.s32.totalorder %s25, 0
      %p151 = por %p149, %p150
      %p152 = scmp.ne.s32.totalorder %s140, %s141
      %p153 = scmp.eq.s32.totalorder %s26, 1
      %p154 = por %p152, %p153
      %p156 = scmp.ne.s32.totalorder %s141, %s155
      %p157 = scmp.eq.s32.totalorder %s26, 0
      %p158 = por %p156, %p157
      %s160 = sadd.s32 %s159, 1
      %p163 = scmp.eq.s32.totalorder %s20, 1
      %p164 = scmp.ne.s32.totalorder %s159, %s161
      %p165 = scmp.eq.s32.totalorder %s20, 0
      %p166 = por %p164, %p165
      %p167 = scmp.ne.s32.totalorder %s159, %s161
      %p168 = scmp.eq.s32.totalorder %s25, 1
      %p169 = por %p167, %p168
      %p170 = scmp.ne.s32.totalorder %s161, %s162
      %p171 = scmp.eq.s32.totalorder %s25, 0
      %p172 = por %p170, %p171
      %p173 = scmp.ne.s32.totalorder %s161, %s162
      %p174 = scmp.eq.s32.totalorder %s26, 1
      %p175 = por %p173, %p174
      %p177 = scmp.ne.s32.totalorder %s162, %s176
      %p178 = scmp.eq.s32.totalorder %s26, 0
      %p179 = por %p177, %p178
      %s181 = sadd.s32 %s180, 1
      %p184 = scmp.eq.s32.totalorder %s20, 1
      %p185 = scmp.ne.s32.totalorder %s180, %s182
      %p186 = scmp.eq.s32.totalorder %s20, 0
      %p187 = por %p185, %p186
      %p188 = scmp.ne.s32.totalorder %s180, %s182
      %p189 = scmp.eq.s32.totalorder %s25, 1
      %p190 = por %p188, %p189
      %p191 = scmp.ne.s32.totalorder %s182, %s183
      %p192 = scmp.eq.s32.totalorder %s25, 0
      %p193 = por %p191, %p192
      %p194 = scmp.ne.s32.totalorder %s182, %s183
      %p195 = scmp.eq.s32.totalorder %s26, 1
      %p196 = por %p194, %p195
      %p198 = scmp.ne.s32.totalorder %s183, %s197
      %p199 = scmp.eq.s32.totalorder %s26, 0
      %p200 = por %p198, %p199
      %s202 = sadd.s32 %s201, 1
      %p205 = scmp.eq.s32.totalorder %s20, 1
      %p206 = scmp.ne.s32.totalorder %s201, %s203
      %p207 = scmp.eq.s32.totalorder %s20, 0
      %p208 = por %p206, %p207
      %p209 = scmp.ne.s32.totalorder %s201, %s203
      %p210 = scmp.eq.s32.totalorder %s25, 1
      %p211 = por %p209, %p210
      %p212 = scmp.ne.s32.totalorder %s203, %s204
      %p213 = scmp.eq.s32.totalorder %s25, 0
      %p214 = por %p212, %p213
      %p215 = scmp.ne.s32.totalorder %s203, %s204
      %p216 = scmp.eq.s32.totalorder %s26, 1
      %p217 = por %p215, %p216
      %p219 = scmp.ne.s32.totalorder %s204, %s218
      %p220 = scmp.eq.s32.totalorder %s26, 0
      %p221 = por %p219, %p220
      %s222 = ssub.s32 %s20, %s27
      %p223 = scmp.eq.s32.totalorder %s222, 0
      %s225 = sadd.s32 %s224, 1
      %s226 = scalar_select %p223, %s224, %s225
      %p229 = pneg %p223
      %p230 = scmp.eq.s32.totalorder %s20, 1
      %p231 = por %p229, %p230
      %p232 = scmp.ne.s32.totalorder %s224, %s227
      %p233 = scmp.eq.s32.totalorder %s20, 0
      %p234 = por %p232, %p233
      %p235 = scmp.ne.s32.totalorder %s224, %s227
      %p236 = scmp.eq.s32.totalorder %s25, 1
      %p237 = por %p235, %p236
      %p238 = scmp.ne.s32.totalorder %s227, %s228
      %p239 = scmp.eq.s32.totalorder %s25, 0
      %p240 = por %p238, %p239
      %p241 = scmp.ne.s32.totalorder %s227, %s228
      %p242 = scmp.eq.s32.totalorder %s26, 1
      %p243 = por %p241, %p242
      %p245 = scmp.ne.s32.totalorder %s228, %s244
      %p246 = scmp.eq.s32.totalorder %s26, 0
      %p247 = por %p245, %p246
      %p248 = scmp.le.s32.totalorder 1, %s20
      %p249 = scmp.lt.s32.totalorder %s20, 3
      %p250 = pnand %p248, %p249
      %p251 = pneg %p250
      // Predicated region
      $region9: #{tpu_custom_call.1} parent=5 // pred_check
        _
      $region10: #{tpu_custom_call.1} parent=5 // pred_check_branch
        %253 = sbr.rel (%p250) target = $region12
      $region11: #{tpu_custom_call.1} parent=5 // pred_region
        %s254 = ssub.s32 %s20, 1
        // Predicated region
        $region13: #{tpu_custom_call.1} parent=11 // pred_check
          %p255 = pneg %p67
        $region14: #{tpu_custom_call.1} parent=11 // pred_check_branch
          %257 = sbr.rel (%p255) target = $region16
        $region15: #{tpu_custom_call.1} parent=11 // pred_region
          _
        $region16: #{tpu_custom_call.1} parent=11 // pred_fallthru
          _
        // Predicated region
        $region17: #{tpu_custom_call.1} parent=11 // pred_check
          %p258 = pneg %p88
        $region18: #{tpu_custom_call.1} parent=11 // pred_check_branch
          %260 = sbr.rel (%p258) target = $region20
        $region19: #{tpu_custom_call.1} parent=11 // pred_region
          _
        $region20: #{tpu_custom_call.1} parent=11 // pred_fallthru
          _
        // Predicated region
        $region21: #{tpu_custom_call.1} parent=11 // pred_check
          %p261 = pneg %p109
        $region22: #{tpu_custom_call.1} parent=11 // pred_check_branch
          %263 = sbr.rel (%p261) target = $region24
        $region23: #{tpu_custom_call.1} parent=11 // pred_region
          _
        $region24: #{tpu_custom_call.1} parent=11 // pred_fallthru
          _
        // Predicated region
        $region25: #{tpu_custom_call.1} parent=11 // pred_check
          %p264 = pneg %p130
        $region26: #{tpu_custom_call.1} parent=11 // pred_check_branch
          %266 = sbr.rel (%p264) target = $region28
        $region27: #{tpu_custom_call.1} parent=11 // pred_region
          _
        $region28: #{tpu_custom_call.1} parent=11 // pred_fallthru
          _
        // Predicated region
        $region29: #{tpu_custom_call.1} parent=11 // pred_check
          %p267 = pneg %p151
        $region30: #{tpu_custom_call.1} parent=11 // pred_check_branch
          %269 = sbr.rel (%p267) target = $region32
        $region31: #{tpu_custom_call.1} parent=11 // pred_region
          _
        $region32: #{tpu_custom_call.1} parent=11 // pred_fallthru
          _
        // Predicated region
        $region33: #{tpu_custom_call.1} parent=11 // pred_check
          %p270 = pneg %p172
        $region34: #{tpu_custom_call.1} parent=11 // pred_check_branch
          %272 = sbr.rel (%p270) target = $region36
        $region35: #{tpu_custom_call.1} parent=11 // pred_region
          _
        $region36: #{tpu_custom_call.1} parent=11 // pred_fallthru
          _
        // Predicated region
        $region37: #{tpu_custom_call.1} parent=11 // pred_check
          %p273 = pneg %p193
        $region38: #{tpu_custom_call.1} parent=11 // pred_check_branch
          %275 = sbr.rel (%p273) target = $region40
        $region39: #{tpu_custom_call.1} parent=11 // pred_region
          _
        $region40: #{tpu_custom_call.1} parent=11 // pred_fallthru
          _
        // Predicated region
        $region41: #{tpu_custom_call.1} parent=11 // pred_check
          %p276 = pneg %p214
        $region42: #{tpu_custom_call.1} parent=11 // pred_check_branch
          %278 = sbr.rel (%p276) target = $region44
        $region43: #{tpu_custom_call.1} parent=11 // pred_region
          _
        $region44: #{tpu_custom_call.1} parent=11 // pred_fallthru
          _
      $region12: #{tpu_custom_call.1} parent=5 // pred_fallthru
        _
      %p279 = scmp.lt.s32.totalorder %s20, 2
      // Predicated region
      $region45: #{tpu_custom_call.1} parent=5 // pred_check
        %p280 = pneg %p279
      $region46: #{tpu_custom_call.1} parent=5 // pred_check_branch
        %282 = sbr.rel (%p280) target = $region48
      $region47: #{tpu_custom_call.1} parent=5 // pred_region
        // Predicated region
        $region49: #{tpu_custom_call.1} parent=47 // pred_check
          %p283 = pneg %p40
        $region50: #{tpu_custom_call.1} parent=47 // pred_check_branch
          %285 = sbr.rel (%p283) target = $region52
        $region51: #{tpu_custom_call.1} parent=47 // pred_region
          %p286 = scmp.lt.s32.totalorder %s20, 1
          %s287 = scalar_select %p286, %s20, 1
          %s288 = smul.addr %s287, 2
          %s289 = smul.addr %s288, 8
          %s290 = scalar_lea.vmem %s0, %s289
        $region52: #{tpu_custom_call.1} parent=47 // pred_fallthru
          _
      $region48: #{tpu_custom_call.1} parent=5 // pred_fallthru
        _
      %p291 = scmp.le.s32.totalorder 1, %s20
      %p292 = scmp.lt.s32.totalorder %s20, 3
      %p293 = pnand %p291, %p292
      %p294 = pneg %p293
      // Predicated region
      $region53: #{tpu_custom_call.1} parent=5 // pred_check
        _
      $region54: #{tpu_custom_call.1} parent=5 // pred_check_branch
        %296 = sbr.rel (%p293) target = $region56
      $region55: #{tpu_custom_call.1} parent=5 // pred_region
        %s297 = ssub.s32 %s20, 1
        %p298 = scmp.lt.s32.totalorder %s25, 1
        %s299 = scalar_select %p298, %s25, 1
        %s300 = smul.addr %s299, 2
        %s301 = smul.addr %s300, 8
        %s302 = scalar_lea.vmem %s0, %s301
        %p303 = pneg %p46
        %p304 = pneg %p43
        %p305 = pneg %p67
        %p306 = pneg %p64
        %p307 = pneg %p88
        %p308 = pneg %p85
        %p309 = pneg %p109
        %p310 = pneg %p106
        %p311 = pneg %p130
        %p312 = pneg %p127
        %p313 = pneg %p151
        %p314 = pneg %p148
        %p315 = pneg %p172
        %p316 = pneg %p169
        %p317 = pneg %p193
        %p318 = pneg %p190
        %p319 = pneg %p214
        %p320 = pneg %p211
        %p321 = pneg %p240
        %p322 = pneg %p237
        %s323 = sand.u32 %s227, 1
        %s324 = scalar_lea.sflag [#allocation4], %s323
        %s325 = sand.u32 %s227, 1
        %s326 = smul.addr %s325, 32
        %s327 = scalar_lea.vmem [#allocation3], %s326
        %p328 = scmp.lt.s32.totalorder %s25, 1
        %s329 = scalar_select %p328, %s25, 1
        %s330 = smul.addr %s329, 2
        %s331 = smul.addr %s330, 8
        %s332 = scalar_lea.vmem %s0, %s331
        %v333 = vld [vmem:[%s332] sm:$0xff]
        %v334 = vld [vmem:[%s332 + $0x8] sm:$0xff]
        %v335 = vld [vmem:[%s7] sm:$0x3]
        %v336 = vld [vmem:[%s8] sm:$0x3]
        %v337 = vld [vmem:[%s1] sm:$0xff]
        %v338 = vld [vmem:[%s1 + $0x8] sm:$0xff]
        %v339 = vld [vmem:[%s1 + $0x10] sm:$0xff]
        %v340 = vld [vmem:[%s1 + $0x18] sm:$0xff]
        %v341 = vld [vmem:[%s1 + $0x20] sm:$0xff]
        %v342 = vld [vmem:[%s1 + $0x28] sm:$0xff]
        %v343 = vld [vmem:[%s1 + $0x30] sm:$0xff]
        %v344 = vld [vmem:[%s1 + $0x38] sm:$0xff]
        %v345 = vld [vmem:[%s1 + $0x40] sm:$0xff]
        %348 = vrot.lane.b32.xlu0 %v333, 17
        %v349 = vpop.permute.xlu0 %348
        %350 = vrot.lane.b32.xlu0 %v334, 17
        %v351 = vpop.permute.xlu0 %350
        %vm352 = vcmask 138240
        %v353 = vsel %vm352, %v349, %v351
        %v356 = vsel %vm352, 0.0, %v349
        %vm357 = vcmp.ge.s32.totalorder %v335, 1
        %vm358 = vcmp.ge.s32.totalorder %v336, 1
        %vm359 = vmand %vm357, %vm358
        %v360 = vsel %vm359, 1, 0
        %v361 = vlaneseq
        %v362 = vshrl.u32 %v361, 7
        %v363 = vsub.s32 0, %v362
        %v364 = vrot.slane %v360, %v363
        %v365 = vlaneseq
        %v366 = vshrl.u32 %v365, 7
        %v367 = vsub.s32 1, %v366
        %v368 = vrot.slane %v360, %v367
        %vm369 = vcmp.eq.s32.totalorder %v364, 1
        %vm370 = vcmp.eq.s32.totalorder %v368, 1
        %v371 = vsel %vm369, %v356, 0.0
        %v372 = vsel %vm370, %v353, 0.0
        %373 = vrot.lane.b32.xlu0 %v333, 16
        %v374 = vpop.permute.xlu0 %373
        %375 = vrot.lane.b32.xlu0 %v334, 16
        %v376 = vpop.permute.xlu0 %375
        %vm377 = vcmask 130048
        %v378 = vsel %vm377, %v374, %v376
        %v381 = vsel %vm377, 0.0, %v374
        %v382 = vsel %vm357, 1, 0
        %v383 = vlaneseq
        %v384 = vshrl.u32 %v383, 7
        %v385 = vsub.s32 0, %v384
        %v386 = vrot.slane %v382, %v385
        %v387 = vlaneseq
        %v388 = vshrl.u32 %v387, 7
        %v389 = vsub.s32 1, %v388
        %v390 = vrot.slane %v382, %v389
        %vm391 = vcmp.eq.s32.totalorder %v386, 1
        %vm392 = vcmp.eq.s32.totalorder %v390, 1
        %v393 = vsel %vm391, %v381, 0.0
        %v394 = vsel %vm392, %v378, 0.0
        %vm395 = vcmask 64512
        %v397 = vsel %vm395, %v338, 0
        %399 = vmatprep.subr.mxu0 0.0
        %400 = vmatpush1.msra.mxu0 0.0
        %401 = vmatprep.subr.mxu0 0.0
        %402 = vmatpush1.msra.mxu0 0.0
        %403 = vmatprep.subr.mxu0 0.0
        %404 = vmatpush1.msra.mxu0 0.0
        %405 = vmatprep.subr.mxu0 0.0
        %406 = vmatpush1.msra.mxu0 0.0
        %407 = vmatprep.subr.mxu0 0.0
        %408 = vmatpush1.msra.mxu0 0.0
        %409 = vmatprep.subr.mxu0 0.0
        %410 = vmatpush1.msra.mxu0 0.0
        %411 = vmatprep.subr.mxu0 0.0
        %412 = vmatpush1.msra.mxu0 0.0
        %413 = vmatprep.subr.mxu0 0.0
        %414 = vmatpush1.msra.mxu0 0.0
        %415 = vmatprep.subr.mxu0 0.0
        %416 = vmatpush1.msra.mxu0 0.0
        %417 = vmatprep.subr.mxu0 0.0
        %418 = vmatpush1.msra.mxu0 0.0
        %419 = vmatprep.subr.mxu0 0.0
        %420 = vmatpush1.msra.mxu0 0.0
        %421 = vmatprep.subr.mxu0 0.0
        %422 = vmatpush1.msra.mxu0 0.0
        %423 = vmatprep.subr.mxu0 0.0
        %424 = vmatpush1.msra.mxu0 0.0
        %425 = vmatprep.subr.mxu0 0.0
        %426 = vmatpush1.msra.mxu0 0.0
        %427 = vmatprep.subr.mxu0 0.0
        %428 = vmatpush1.msra.mxu0 0.0
        %429 = vmatprep.subr.mxu0 %v394
        %430 = vmatpush1.msra.mxu0 %v393
        %431 = vmatprep.subr.mxu0 0.0
        %432 = vmatpush2.msra.mxu0 0.0
        %433 = vmatprep.subr.mxu0 0.0
        %434 = vmatpush2.msra.mxu0 0.0
        %435 = vmatprep.subr.mxu0 0.0
        %436 = vmatpush2.msra.mxu0 0.0
        %437 = vmatprep.subr.mxu0 0.0
        %438 = vmatpush2.msra.mxu0 0.0
        %439 = vmatprep.subr.mxu0 0.0
        %440 = vmatpush2.msra.mxu0 0.0
        %441 = vmatprep.subr.mxu0 0.0
        %442 = vmatpush2.msra.mxu0 0.0
        %443 = vmatprep.subr.mxu0 0.0
        %444 = vmatpush2.msra.mxu0 0.0
        %445 = vmatprep.subr.mxu0 0.0
        %446 = vmatpush2.msra.mxu0 0.0
        %447 = vmatprep.subr.mxu0 0.0
        %448 = vmatpush2.msra.mxu0 0.0
        %449 = vmatprep.subr.mxu0 0.0
        %450 = vmatpush2.msra.mxu0 0.0
        %451 = vmatprep.subr.mxu0 0.0
        %452 = vmatpush2.msra.mxu0 0.0
        %453 = vmatprep.subr.mxu0 0.0
        %454 = vmatpush2.msra.mxu0 0.0
        %455 = vmatprep.subr.mxu0 0.0
        %456 = vmatpush2.msra.mxu0 0.0
        %457 = vmatprep.subr.mxu0 0.0
        %458 = vmatpush2.msra.mxu0 0.0
        %459 = vmatprep.subr.mxu0 0.0
        %460 = vmatpush2.msra.mxu0 0.0
        %461 = vmatprep.subr.mxu0 0.0
        %462 = vmatpush2.msra.mxu0 0.0
        %463 = vmatprep.mubr.f32.mxu0 0.0
        %464 = vmatmul.mubr.f32.gmra.mxu0 %v397
        %v465 = vpop.f32.mrf.mxu0
        %v466 = vadd.f32 0.0, %v465
        %v467 = vpop.f32.mrf.mxu0
        %v468 = vadd.f32 0.0, %v467
        %469 = vdwg.mxu0
        %v471 = vsel %vm395, %v337, 0
        %473 = vmatprep.subr.mxu0 0.0
        %474 = vmatpush1.msra.mxu0 0.0
        %475 = vmatprep.subr.mxu0 0.0
        %476 = vmatpush1.msra.mxu0 0.0
        %477 = vmatprep.subr.mxu0 0.0
        %478 = vmatpush1.msra.mxu0 0.0
        %479 = vmatprep.subr.mxu0 0.0
        %480 = vmatpush1.msra.mxu0 0.0
        %481 = vmatprep.subr.mxu0 0.0
        %482 = vmatpush1.msra.mxu0 0.0
        %483 = vmatprep.subr.mxu0 0.0
        %484 = vmatpush1.msra.mxu0 0.0
        %485 = vmatprep.subr.mxu0 0.0
        %486 = vmatpush1.msra.mxu0 0.0
        %487 = vmatprep.subr.mxu0 0.0
        %488 = vmatpush1.msra.mxu0 0.0
        %489 = vmatprep.subr.mxu0 0.0
        %490 = vmatpush1.msra.mxu0 0.0
        %491 = vmatprep.subr.mxu0 0.0
        %492 = vmatpush1.msra.mxu0 0.0
        %493 = vmatprep.subr.mxu0 0.0
        %494 = vmatpush1.msra.mxu0 0.0
        %495 = vmatprep.subr.mxu0 0.0
        %496 = vmatpush1.msra.mxu0 0.0
        %497 = vmatprep.subr.mxu0 0.0
        %498 = vmatpush1.msra.mxu0 0.0
        %499 = vmatprep.subr.mxu0 0.0
        %500 = vmatpush1.msra.mxu0 0.0
        %501 = vmatprep.subr.mxu0 0.0
        %502 = vmatpush1.msra.mxu0 0.0
        %503 = vmatprep.subr.mxu0 %v372
        %504 = vmatpush1.msra.mxu0 %v371
        %505 = vmatprep.subr.mxu0 0.0
        %506 = vmatpush2.msra.mxu0 0.0
        %507 = vmatprep.subr.mxu0 0.0
        %508 = vmatpush2.msra.mxu0 0.0
        %509 = vmatprep.subr.mxu0 0.0
        %510 = vmatpush2.msra.mxu0 0.0
        %511 = vmatprep.subr.mxu0 0.0
        %512 = vmatpush2.msra.mxu0 0.0
        %513 = vmatprep.subr.mxu0 0.0
        %514 = vmatpush2.msra.mxu0 0.0
        %515 = vmatprep.subr.mxu0 0.0
        %516 = vmatpush2.msra.mxu0 0.0
        %517 = vmatprep.subr.mxu0 0.0
        %518 = vmatpush2.msra.mxu0 0.0
        %519 = vmatprep.subr.mxu0 0.0
        %520 = vmatpush2.msra.mxu0 0.0
        %521 = vmatprep.subr.mxu0 0.0
        %522 = vmatpush2.msra.mxu0 0.0
        %523 = vmatprep.subr.mxu0 0.0
        %524 = vmatpush2.msra.mxu0 0.0
        %525 = vmatprep.subr.mxu0 0.0
        %526 = vmatpush2.msra.mxu0 0.0
        %527 = vmatprep.subr.mxu0 0.0
        %528 = vmatpush2.msra.mxu0 0.0
        %529 = vmatprep.subr.mxu0 0.0
        %530 = vmatpush2.msra.mxu0 0.0
        %531 = vmatprep.subr.mxu0 0.0
        %532 = vmatpush2.msra.mxu0 0.0
        %533 = vmatprep.subr.mxu0 0.0
        %534 = vmatpush2.msra.mxu0 0.0
        %535 = vmatprep.subr.mxu0 0.0
        %536 = vmatpush2.msra.mxu0 0.0
        %537 = vmatprep.mubr.f32.mxu0 0.0
        %538 = vmatmul.mubr.f32.gmra.mxu0 %v471
        %v539 = vpop.f32.mrf.mxu0
        %v540 = vadd.f32 %v466, %v539
        %v541 = vpop.f32.mrf.mxu0
        %v542 = vadd.f32 %v468, %v541
        %543 = vdwg.mxu0
        %544 = vrot.lane.b32.xlu0 %v333, 15
        %v545 = vpop.permute.xlu0 %544
        %546 = vrot.lane.b32.xlu0 %v334, 15
        %v547 = vpop.permute.xlu0 %546
        %vm548 = vcmask 121856
        %v549 = vsel %vm548, %v545, %v547
        %v552 = vsel %vm548, 0.0, %v545
        %vm553 = vcmp.lt.s32.totalorder %v336, 15
        %vm554 = vmand %vm357, %vm553
        %v555 = vsel %vm554, 1, 0
        %v556 = vlaneseq
        %v557 = vshrl.u32 %v556, 7
        %v558 = vsub.s32 0, %v557
        %v559 = vrot.slane %v555, %v558
        %v560 = vlaneseq
        %v561 = vshrl.u32 %v560, 7
        %v562 = vsub.s32 1, %v561
        %v563 = vrot.slane %v555, %v562
        %vm564 = vcmp.eq.s32.totalorder %v559, 1
        %vm565 = vcmp.eq.s32.totalorder %v563, 1
        %v566 = vsel %vm564, %v552, 0.0
        %v567 = vsel %vm565, %v549, 0.0
        %v569 = vsel %vm395, %v339, 0
        %571 = vmatprep.subr.mxu0 0.0
        %572 = vmatpush1.msra.mxu0 0.0
        %573 = vmatprep.subr.mxu0 0.0
        %574 = vmatpush1.msra.mxu0 0.0
        %575 = vmatprep.subr.mxu0 0.0
        %576 = vmatpush1.msra.mxu0 0.0
        %577 = vmatprep.subr.mxu0 0.0
        %578 = vmatpush1.msra.mxu0 0.0
        %579 = vmatprep.subr.mxu0 0.0
        %580 = vmatpush1.msra.mxu0 0.0
        %581 = vmatprep.subr.mxu0 0.0
        %582 = vmatpush1.msra.mxu0 0.0
        %583 = vmatprep.subr.mxu0 0.0
        %584 = vmatpush1.msra.mxu0 0.0
        %585 = vmatprep.subr.mxu0 0.0
        %586 = vmatpush1.msra.mxu0 0.0
        %587 = vmatprep.subr.mxu0 0.0
        %588 = vmatpush1.msra.mxu0 0.0
        %589 = vmatprep.subr.mxu0 0.0
        %590 = vmatpush1.msra.mxu0 0.0
        %591 = vmatprep.subr.mxu0 0.0
        %592 = vmatpush1.msra.mxu0 0.0
        %593 = vmatprep.subr.mxu0 0.0
        %594 = vmatpush1.msra.mxu0 0.0
        %595 = vmatprep.subr.mxu0 0.0
        %596 = vmatpush1.msra.mxu0 0.0
        %597 = vmatprep.subr.mxu0 0.0
        %598 = vmatpush1.msra.mxu0 0.0
        %599 = vmatprep.subr.mxu0 0.0
        %600 = vmatpush1.msra.mxu0 0.0
        %601 = vmatprep.subr.mxu0 %v567
        %602 = vmatpush1.msra.mxu0 %v566
        %603 = vmatprep.subr.mxu0 0.0
        %604 = vmatpush2.msra.mxu0 0.0
        %605 = vmatprep.subr.mxu0 0.0
        %606 = vmatpush2.msra.mxu0 0.0
        %607 = vmatprep.subr.mxu0 0.0
        %608 = vmatpush2.msra.mxu0 0.0
        %609 = vmatprep.subr.mxu0 0.0
        %610 = vmatpush2.msra.mxu0 0.0
        %611 = vmatprep.subr.mxu0 0.0
        %612 = vmatpush2.msra.mxu0 0.0
        %613 = vmatprep.subr.mxu0 0.0
        %614 = vmatpush2.msra.mxu0 0.0
        %615 = vmatprep.subr.mxu0 0.0
        %616 = vmatpush2.msra.mxu0 0.0
        %617 = vmatprep.subr.mxu0 0.0
        %618 = vmatpush2.msra.mxu0 0.0
        %619 = vmatprep.subr.mxu0 0.0
        %620 = vmatpush2.msra.mxu0 0.0
        %621 = vmatprep.subr.mxu0 0.0
        %622 = vmatpush2.msra.mxu0 0.0
        %623 = vmatprep.subr.mxu0 0.0
        %624 = vmatpush2.msra.mxu0 0.0
        %625 = vmatprep.subr.mxu0 0.0
        %626 = vmatpush2.msra.mxu0 0.0
        %627 = vmatprep.subr.mxu0 0.0
        %628 = vmatpush2.msra.mxu0 0.0
        %629 = vmatprep.subr.mxu0 0.0
        %630 = vmatpush2.msra.mxu0 0.0
        %631 = vmatprep.subr.mxu0 0.0
        %632 = vmatpush2.msra.mxu0 0.0
        %633 = vmatprep.subr.mxu0 0.0
        %634 = vmatpush2.msra.mxu0 0.0
        %635 = vmatprep.mubr.f32.mxu0 0.0
        %636 = vmatmul.mubr.f32.gmra.mxu0 %v569
        %v637 = vpop.f32.mrf.mxu0
        %v638 = vadd.f32 0.0, %v637
        %v639 = vpop.f32.mrf.mxu0
        %v640 = vadd.f32 0.0, %v639
        %641 = vdwg.mxu0
        %v642 = vadd.f32 %v540, %v638
        %v643 = vadd.f32 %v542, %v640
        %644 = vrot.lane.b32.xlu0 %v333, 1
        %v645 = vpop.permute.xlu0 %644
        %646 = vrot.lane.b32.xlu0 %v334, 1
        %v647 = vpop.permute.xlu0 %646
        %vm648 = vcmask 7168
        %v649 = vsel %vm648, %v645, %v647
        %v652 = vsel %vm648, 0.0, %v645
        %v653 = vsel %vm358, 1, 0
        %v654 = vlaneseq
        %v655 = vshrl.u32 %v654, 7
        %v656 = vsub.s32 0, %v655
        %v657 = vrot.slane %v653, %v656
        %v658 = vlaneseq
        %v659 = vshrl.u32 %v658, 7
        %v660 = vsub.s32 1, %v659
        %v661 = vrot.slane %v653, %v660
        %vm662 = vcmp.eq.s32.totalorder %v657, 1
        %vm663 = vcmp.eq.s32.totalorder %v661, 1
        %v664 = vsel %vm662, %v652, 0.0
        %v665 = vsel %vm663, %v649, 0.0
        %v667 = vsel %vm395, %v340, 0
        %669 = vmatprep.subr.mxu0 0.0
        %670 = vmatpush1.msra.mxu0 0.0
        %671 = vmatprep.subr.mxu0 0.0
        %672 = vmatpush1.msra.mxu0 0.0
        %673 = vmatprep.subr.mxu0 0.0
        %674 = vmatpush1.msra.mxu0 0.0
        %675 = vmatprep.subr.mxu0 0.0
        %676 = vmatpush1.msra.mxu0 0.0
        %677 = vmatprep.subr.mxu0 0.0
        %678 = vmatpush1.msra.mxu0 0.0
        %679 = vmatprep.subr.mxu0 0.0
        %680 = vmatpush1.msra.mxu0 0.0
        %681 = vmatprep.subr.mxu0 0.0
        %682 = vmatpush1.msra.mxu0 0.0
        %683 = vmatprep.subr.mxu0 0.0
        %684 = vmatpush1.msra.mxu0 0.0
        %685 = vmatprep.subr.mxu0 0.0
        %686 = vmatpush1.msra.mxu0 0.0
        %687 = vmatprep.subr.mxu0 0.0
        %688 = vmatpush1.msra.mxu0 0.0
        %689 = vmatprep.subr.mxu0 0.0
        %690 = vmatpush1.msra.mxu0 0.0
        %691 = vmatprep.subr.mxu0 0.0
        %692 = vmatpush1.msra.mxu0 0.0
        %693 = vmatprep.subr.mxu0 0.0
        %694 = vmatpush1.msra.mxu0 0.0
        %695 = vmatprep.subr.mxu0 0.0
        %696 = vmatpush1.msra.mxu0 0.0
        %697 = vmatprep.subr.mxu0 0.0
        %698 = vmatpush1.msra.mxu0 0.0
        %699 = vmatprep.subr.mxu0 %v665
        %700 = vmatpush1.msra.mxu0 %v664
        %701 = vmatprep.subr.mxu0 0.0
        %702 = vmatpush2.msra.mxu0 0.0
        %703 = vmatprep.subr.mxu0 0.0
        %704 = vmatpush2.msra.mxu0 0.0
        %705 = vmatprep.subr.mxu0 0.0
        %706 = vmatpush2.msra.mxu0 0.0
        %707 = vmatprep.subr.mxu0 0.0
        %708 = vmatpush2.msra.mxu0 0.0
        %709 = vmatprep.subr.mxu0 0.0
        %710 = vmatpush2.msra.mxu0 0.0
        %711 = vmatprep.subr.mxu0 0.0
        %712 = vmatpush2.msra.mxu0 0.0
        %713 = vmatprep.subr.mxu0 0.0
        %714 = vmatpush2.msra.mxu0 0.0
        %715 = vmatprep.subr.mxu0 0.0
        %716 = vmatpush2.msra.mxu0 0.0
        %717 = vmatprep.subr.mxu0 0.0
        %718 = vmatpush2.msra.mxu0 0.0
        %719 = vmatprep.subr.mxu0 0.0
        %720 = vmatpush2.msra.mxu0 0.0
        %721 = vmatprep.subr.mxu0 0.0
        %722 = vmatpush2.msra.mxu0 0.0
        %723 = vmatprep.subr.mxu0 0.0
        %724 = vmatpush2.msra.mxu0 0.0
        %725 = vmatprep.subr.mxu0 0.0
        %726 = vmatpush2.msra.mxu0 0.0
        %727 = vmatprep.subr.mxu0 0.0
        %728 = vmatpush2.msra.mxu0 0.0
        %729 = vmatprep.subr.mxu0 0.0
        %730 = vmatpush2.msra.mxu0 0.0
        %731 = vmatprep.subr.mxu0 0.0
        %732 = vmatpush2.msra.mxu0 0.0
        %733 = vmatprep.mubr.f32.mxu0 0.0
        %734 = vmatmul.mubr.f32.gmra.mxu0 %v667
        %v735 = vpop.f32.mrf.mxu0
        %v736 = vadd.f32 0.0, %v735
        %v737 = vpop.f32.mrf.mxu0
        %v738 = vadd.f32 0.0, %v737
        %739 = vdwg.mxu0
        %v740 = vadd.f32 %v642, %v736
        %v741 = vadd.f32 %v643, %v738
        %v743 = vsel %vm395, %v341, 0
        %745 = vmatprep.subr.mxu0 0.0
        %746 = vmatpush1.msra.mxu0 0.0
        %747 = vmatprep.subr.mxu0 0.0
        %748 = vmatpush1.msra.mxu0 0.0
        %749 = vmatprep.subr.mxu0 0.0
        %750 = vmatpush1.msra.mxu0 0.0
        %751 = vmatprep.subr.mxu0 0.0
        %752 = vmatpush1.msra.mxu0 0.0
        %753 = vmatprep.subr.mxu0 0.0
        %754 = vmatpush1.msra.mxu0 0.0
        %755 = vmatprep.subr.mxu0 0.0
        %756 = vmatpush1.msra.mxu0 0.0
        %757 = vmatprep.subr.mxu0 0.0
        %758 = vmatpush1.msra.mxu0 0.0
        %759 = vmatprep.subr.mxu0 0.0
        %760 = vmatpush1.msra.mxu0 0.0
        %761 = vmatprep.subr.mxu0 0.0
        %762 = vmatpush1.msra.mxu0 0.0
        %763 = vmatprep.subr.mxu0 0.0
        %764 = vmatpush1.msra.mxu0 0.0
        %765 = vmatprep.subr.mxu0 0.0
        %766 = vmatpush1.msra.mxu0 0.0
        %767 = vmatprep.subr.mxu0 0.0
        %768 = vmatpush1.msra.mxu0 0.0
        %769 = vmatprep.subr.mxu0 0.0
        %770 = vmatpush1.msra.mxu0 0.0
        %771 = vmatprep.subr.mxu0 0.0
        %772 = vmatpush1.msra.mxu0 0.0
        %773 = vmatprep.subr.mxu0 0.0
        %774 = vmatpush1.msra.mxu0 0.0
        %775 = vmatprep.subr.mxu0 %v334
        %776 = vmatpush1.msra.mxu0 %v333
        %777 = vmatprep.subr.mxu0 0.0
        %778 = vmatpush2.msra.mxu0 0.0
        %779 = vmatprep.subr.mxu0 0.0
        %780 = vmatpush2.msra.mxu0 0.0
        %781 = vmatprep.subr.mxu0 0.0
        %782 = vmatpush2.msra.mxu0 0.0
        %783 = vmatprep.subr.mxu0 0.0
        %784 = vmatpush2.msra.mxu0 0.0
        %785 = vmatprep.subr.mxu0 0.0
        %786 = vmatpush2.msra.mxu0 0.0
        %787 = vmatprep.subr.mxu0 0.0
        %788 = vmatpush2.msra.mxu0 0.0
        %789 = vmatprep.subr.mxu0 0.0
        %790 = vmatpush2.msra.mxu0 0.0
        %791 = vmatprep.subr.mxu0 0.0
        %792 = vmatpush2.msra.mxu0 0.0
        %793 = vmatprep.subr.mxu0 0.0
        %794 = vmatpush2.msra.mxu0 0.0
        %795 = vmatprep.subr.mxu0 0.0
        %796 = vmatpush2.msra.mxu0 0.0
        %797 = vmatprep.subr.mxu0 0.0
        %798 = vmatpush2.msra.mxu0 0.0
        %799 = vmatprep.subr.mxu0 0.0
        %800 = vmatpush2.msra.mxu0 0.0
        %801 = vmatprep.subr.mxu0 0.0
        %802 = vmatpush2.msra.mxu0 0.0
        %803 = vmatprep.subr.mxu0 0.0
        %804 = vmatpush2.msra.mxu0 0.0
        %805 = vmatprep.subr.mxu0 0.0
        %806 = vmatpush2.msra.mxu0 0.0
        %807 = vmatprep.subr.mxu0 0.0
        %808 = vmatpush2.msra.mxu0 0.0
        %809 = vmatprep.mubr.f32.mxu0 0.0
        %810 = vmatmul.mubr.f32.gmra.mxu0 %v743
        %v811 = vpop.f32.mrf.mxu0
        %v812 = vadd.f32 0.0, %v811
        %v813 = vpop.f32.mrf.mxu0
        %v814 = vadd.f32 0.0, %v813
        %815 = vdwg.mxu0
        %v816 = vadd.f32 %v740, %v812
        %v817 = vadd.f32 %v741, %v814
        %818 = vrot.lane.b32.xlu0 %v333, 127
        %v819 = vpop.permute.xlu0 %818
        %820 = vrot.lane.b32.xlu0 %v334, 127
        %v821 = vpop.permute.xlu0 %820
        %vm822 = vcmask 1039360
        %v823 = vsel %vm822, %v819, %v821
        %v826 = vsel %vm822, %v821, 0.0
        %v827 = vsel %vm553, 1, 0
        %v828 = vlaneseq
        %v829 = vshrl.u32 %v828, 7
        %v830 = vsub.s32 0, %v829
        %v831 = vrot.slane %v827, %v830
        %v832 = vlaneseq
        %v833 = vshrl.u32 %v832, 7
        %v834 = vsub.s32 1, %v833
        %v835 = vrot.slane %v827, %v834
        %vm836 = vcmp.eq.s32.totalorder %v831, 1
        %vm837 = vcmp.eq.s32.totalorder %v835, 1
        %v838 = vsel %vm836, %v823, 0.0
        %v839 = vsel %vm837, %v826, 0.0
        %v841 = vsel %vm395, %v342, 0
        %843 = vmatprep.subr.mxu0 0.0
        %844 = vmatpush1.msra.mxu0 0.0
        %845 = vmatprep.subr.mxu0 0.0
        %846 = vmatpush1.msra.mxu0 0.0
        %847 = vmatprep.subr.mxu0 0.0
        %848 = vmatpush1.msra.mxu0 0.0
        %849 = vmatprep.subr.mxu0 0.0
        %850 = vmatpush1.msra.mxu0 0.0
        %851 = vmatprep.subr.mxu0 0.0
        %852 = vmatpush1.msra.mxu0 0.0
        %853 = vmatprep.subr.mxu0 0.0
        %854 = vmatpush1.msra.mxu0 0.0
        %855 = vmatprep.subr.mxu0 0.0
        %856 = vmatpush1.msra.mxu0 0.0
        %857 = vmatprep.subr.mxu0 0.0
        %858 = vmatpush1.msra.mxu0 0.0
        %859 = vmatprep.subr.mxu0 0.0
        %860 = vmatpush1.msra.mxu0 0.0
        %861 = vmatprep.subr.mxu0 0.0
        %862 = vmatpush1.msra.mxu0 0.0
        %863 = vmatprep.subr.mxu0 0.0
        %864 = vmatpush1.msra.mxu0 0.0
        %865 = vmatprep.subr.mxu0 0.0
        %866 = vmatpush1.msra.mxu0 0.0
        %867 = vmatprep.subr.mxu0 0.0
        %868 = vmatpush1.msra.mxu0 0.0
        %869 = vmatprep.subr.mxu0 0.0
        %870 = vmatpush1.msra.mxu0 0.0
        %871 = vmatprep.subr.mxu0 0.0
        %872 = vmatpush1.msra.mxu0 0.0
        %873 = vmatprep.subr.mxu0 %v839
        %874 = vmatpush1.msra.mxu0 %v838
        %875 = vmatprep.subr.mxu0 0.0
        %876 = vmatpush2.msra.mxu0 0.0
        %877 = vmatprep.subr.mxu0 0.0
        %878 = vmatpush2.msra.mxu0 0.0
        %879 = vmatprep.subr.mxu0 0.0
        %880 = vmatpush2.msra.mxu0 0.0
        %881 = vmatprep.subr.mxu0 0.0
        %882 = vmatpush2.msra.mxu0 0.0
        %883 = vmatprep.subr.mxu0 0.0
        %884 = vmatpush2.msra.mxu0 0.0
        %885 = vmatprep.subr.mxu0 0.0
        %886 = vmatpush2.msra.mxu0 0.0
        %887 = vmatprep.subr.mxu0 0.0
        %888 = vmatpush2.msra.mxu0 0.0
        %889 = vmatprep.subr.mxu0 0.0
        %890 = vmatpush2.msra.mxu0 0.0
        %891 = vmatprep.subr.mxu0 0.0
        %892 = vmatpush2.msra.mxu0 0.0
        %893 = vmatprep.subr.mxu0 0.0
        %894 = vmatpush2.msra.mxu0 0.0
        %895 = vmatprep.subr.mxu0 0.0
        %896 = vmatpush2.msra.mxu0 0.0
        %897 = vmatprep.subr.mxu0 0.0
        %898 = vmatpush2.msra.mxu0 0.0
        %899 = vmatprep.subr.mxu0 0.0
        %900 = vmatpush2.msra.mxu0 0.0
        %901 = vmatprep.subr.mxu0 0.0
        %902 = vmatpush2.msra.mxu0 0.0
        %903 = vmatprep.subr.mxu0 0.0
        %904 = vmatpush2.msra.mxu0 0.0
        %905 = vmatprep.subr.mxu0 0.0
        %906 = vmatpush2.msra.mxu0 0.0
        %907 = vmatprep.mubr.f32.mxu0 0.0
        %908 = vmatmul.mubr.f32.gmra.mxu0 %v841
        %v909 = vpop.f32.mrf.mxu0
        %v910 = vadd.f32 0.0, %v909
        %v911 = vpop.f32.mrf.mxu0
        %v912 = vadd.f32 0.0, %v911
        %913 = vdwg.mxu0
        %v914 = vadd.f32 %v816, %v910
        %v915 = vadd.f32 %v817, %v912
        %916 = vrot.lane.b32.xlu0 %v333, 113
        %v917 = vpop.permute.xlu0 %916
        %918 = vrot.lane.b32.xlu0 %v334, 113
        %v919 = vpop.permute.xlu0 %918
        %vm920 = vcmask 924672
        %v921 = vsel %vm920, %v917, %v919
        %v924 = vsel %vm920, %v919, 0.0
        %vm925 = vcmp.lt.s32.totalorder %v335, 15
        %vm926 = vmand %vm925, %vm358
        %v927 = vsel %vm926, 1, 0
        %v928 = vlaneseq
        %v929 = vshrl.u32 %v928, 7
        %v930 = vsub.s32 0, %v929
        %v931 = vrot.slane %v927, %v930
        %v932 = vlaneseq
        %v933 = vshrl.u32 %v932, 7
        %v934 = vsub.s32 1, %v933
        %v935 = vrot.slane %v927, %v934
        %vm936 = vcmp.eq.s32.totalorder %v931, 1
        %vm937 = vcmp.eq.s32.totalorder %v935, 1
        %v938 = vsel %vm936, %v921, 0.0
        %v939 = vsel %vm937, %v924, 0.0
        %v941 = vsel %vm395, %v343, 0
        %943 = vmatprep.subr.mxu0 0.0
        %944 = vmatpush1.msra.mxu0 0.0
        %945 = vmatprep.subr.mxu0 0.0
        %946 = vmatpush1.msra.mxu0 0.0
        %947 = vmatprep.subr.mxu0 0.0
        %948 = vmatpush1.msra.mxu0 0.0
        %949 = vmatprep.subr.mxu0 0.0
        %950 = vmatpush1.msra.mxu0 0.0
        %951 = vmatprep.subr.mxu0 0.0
        %952 = vmatpush1.msra.mxu0 0.0
        %953 = vmatprep.subr.mxu0 0.0
        %954 = vmatpush1.msra.mxu0 0.0
        %955 = vmatprep.subr.mxu0 0.0
        %956 = vmatpush1.msra.mxu0 0.0
        %957 = vmatprep.subr.mxu0 0.0
        %958 = vmatpush1.msra.mxu0 0.0
        %959 = vmatprep.subr.mxu0 0.0
        %960 = vmatpush1.msra.mxu0 0.0
        %961 = vmatprep.subr.mxu0 0.0
        %962 = vmatpush1.msra.mxu0 0.0
        %963 = vmatprep.subr.mxu0 0.0
        %964 = vmatpush1.msra.mxu0 0.0
        %965 = vmatprep.subr.mxu0 0.0
        %966 = vmatpush1.msra.mxu0 0.0
        %967 = vmatprep.subr.mxu0 0.0
        %968 = vmatpush1.msra.mxu0 0.0
        %969 = vmatprep.subr.mxu0 0.0
        %970 = vmatpush1.msra.mxu0 0.0
        %971 = vmatprep.subr.mxu0 0.0
        %972 = vmatpush1.msra.mxu0 0.0
        %973 = vmatprep.subr.mxu0 %v939
        %974 = vmatpush1.msra.mxu0 %v938
        %975 = vmatprep.subr.mxu0 0.0
        %976 = vmatpush2.msra.mxu0 0.0
        %977 = vmatprep.subr.mxu0 0.0
        %978 = vmatpush2.msra.mxu0 0.0
        %979 = vmatprep.subr.mxu0 0.0
        %980 = vmatpush2.msra.mxu0 0.0
        %981 = vmatprep.subr.mxu0 0.0
        %982 = vmatpush2.msra.mxu0 0.0
        %983 = vmatprep.subr.mxu0 0.0
        %984 = vmatpush2.msra.mxu0 0.0
        %985 = vmatprep.subr.mxu0 0.0
        %986 = vmatpush2.msra.mxu0 0.0
        %987 = vmatprep.subr.mxu0 0.0
        %988 = vmatpush2.msra.mxu0 0.0
        %989 = vmatprep.subr.mxu0 0.0
        %990 = vmatpush2.msra.mxu0 0.0
        %991 = vmatprep.subr.mxu0 0.0
        %992 = vmatpush2.msra.mxu0 0.0
        %993 = vmatprep.subr.mxu0 0.0
        %994 = vmatpush2.msra.mxu0 0.0
        %995 = vmatprep.subr.mxu0 0.0
        %996 = vmatpush2.msra.mxu0 0.0
        %997 = vmatprep.subr.mxu0 0.0
        %998 = vmatpush2.msra.mxu0 0.0
        %999 = vmatprep.subr.mxu0 0.0
        %1000 = vmatpush2.msra.mxu0 0.0
        %1001 = vmatprep.subr.mxu0 0.0
        %1002 = vmatpush2.msra.mxu0 0.0
        %1003 = vmatprep.subr.mxu0 0.0
        %1004 = vmatpush2.msra.mxu0 0.0
        %1005 = vmatprep.subr.mxu0 0.0
        %1006 = vmatpush2.msra.mxu0 0.0
        %1007 = vmatprep.mubr.f32.mxu0 0.0
        %1008 = vmatmul.mubr.f32.gmra.mxu0 %v941
        %v1009 = vpop.f32.mrf.mxu0
        %v1010 = vadd.f32 0.0, %v1009
        %v1011 = vpop.f32.mrf.mxu0
        %v1012 = vadd.f32 0.0, %v1011
        %1013 = vdwg.mxu0
        %v1014 = vadd.f32 %v914, %v1010
        %v1015 = vadd.f32 %v915, %v1012
        %1016 = vrot.lane.b32.xlu0 %v333, 112
        %v1017 = vpop.permute.xlu0 %1016
        %1018 = vrot.lane.b32.xlu0 %v334, 112
        %v1019 = vpop.permute.xlu0 %1018
        %vm1020 = vcmask 916480
        %v1021 = vsel %vm1020, %v1017, %v1019
        %v1024 = vsel %vm1020, %v1019, 0.0
        %v1025 = vsel %vm925, 1, 0
        %v1026 = vlaneseq
        %v1027 = vshrl.u32 %v1026, 7
        %v1028 = vsub.s32 0, %v1027
        %v1029 = vrot.slane %v1025, %v1028
        %v1030 = vlaneseq
        %v1031 = vshrl.u32 %v1030, 7
        %v1032 = vsub.s32 1, %v1031
        %v1033 = vrot.slane %v1025, %v1032
        %vm1034 = vcmp.eq.s32.totalorder %v1029, 1
        %vm1035 = vcmp.eq.s32.totalorder %v1033, 1
        %v1036 = vsel %vm1034, %v1021, 0.0
        %v1037 = vsel %vm1035, %v1024, 0.0
        %v1039 = vsel %vm395, %v344, 0
        %1041 = vmatprep.subr.mxu0 0.0
        %1042 = vmatpush1.msra.mxu0 0.0
        %1043 = vmatprep.subr.mxu0 0.0
        %1044 = vmatpush1.msra.mxu0 0.0
        %1045 = vmatprep.subr.mxu0 0.0
        %1046 = vmatpush1.msra.mxu0 0.0
        %1047 = vmatprep.subr.mxu0 0.0
        %1048 = vmatpush1.msra.mxu0 0.0
        %1049 = vmatprep.subr.mxu0 0.0
        %1050 = vmatpush1.msra.mxu0 0.0
        %1051 = vmatprep.subr.mxu0 0.0
        %1052 = vmatpush1.msra.mxu0 0.0
        %1053 = vmatprep.subr.mxu0 0.0
        %1054 = vmatpush1.msra.mxu0 0.0
        %1055 = vmatprep.subr.mxu0 0.0
        %1056 = vmatpush1.msra.mxu0 0.0
        %1057 = vmatprep.subr.mxu0 0.0
        %1058 = vmatpush1.msra.mxu0 0.0
        %1059 = vmatprep.subr.mxu0 0.0
        %1060 = vmatpush1.msra.mxu0 0.0
        %1061 = vmatprep.subr.mxu0 0.0
        %1062 = vmatpush1.msra.mxu0 0.0
        %1063 = vmatprep.subr.mxu0 0.0
        %1064 = vmatpush1.msra.mxu0 0.0
        %1065 = vmatprep.subr.mxu0 0.0
        %1066 = vmatpush1.msra.mxu0 0.0
        %1067 = vmatprep.subr.mxu0 0.0
        %1068 = vmatpush1.msra.mxu0 0.0
        %1069 = vmatprep.subr.mxu0 0.0
        %1070 = vmatpush1.msra.mxu0 0.0
        %1071 = vmatprep.subr.mxu0 %v1037
        %1072 = vmatpush1.msra.mxu0 %v1036
        %1073 = vmatprep.subr.mxu0 0.0
        %1074 = vmatpush2.msra.mxu0 0.0
        %1075 = vmatprep.subr.mxu0 0.0
        %1076 = vmatpush2.msra.mxu0 0.0
        %1077 = vmatprep.subr.mxu0 0.0
        %1078 = vmatpush2.msra.mxu0 0.0
        %1079 = vmatprep.subr.mxu0 0.0
        %1080 = vmatpush2.msra.mxu0 0.0
        %1081 = vmatprep.subr.mxu0 0.0
        %1082 = vmatpush2.msra.mxu0 0.0
        %1083 = vmatprep.subr.mxu0 0.0
        %1084 = vmatpush2.msra.mxu0 0.0
        %1085 = vmatprep.subr.mxu0 0.0
        %1086 = vmatpush2.msra.mxu0 0.0
        %1087 = vmatprep.subr.mxu0 0.0
        %1088 = vmatpush2.msra.mxu0 0.0
        %1089 = vmatprep.subr.mxu0 0.0
        %1090 = vmatpush2.msra.mxu0 0.0
        %1091 = vmatprep.subr.mxu0 0.0
        %1092 = vmatpush2.msra.mxu0 0.0
        %1093 = vmatprep.subr.mxu0 0.0
        %1094 = vmatpush2.msra.mxu0 0.0
        %1095 = vmatprep.subr.mxu0 0.0
        %1096 = vmatpush2.msra.mxu0 0.0
        %1097 = vmatprep.subr.mxu0 0.0
        %1098 = vmatpush2.msra.mxu0 0.0
        %1099 = vmatprep.subr.mxu0 0.0
        %1100 = vmatpush2.msra.mxu0 0.0
        %1101 = vmatprep.subr.mxu0 0.0
        %1102 = vmatpush2.msra.mxu0 0.0
        %1103 = vmatprep.subr.mxu0 0.0
        %1104 = vmatpush2.msra.mxu0 0.0
        %1105 = vmatprep.mubr.f32.mxu0 0.0
        %1106 = vmatmul.mubr.f32.gmra.mxu0 %v1039
        %v1107 = vpop.f32.mrf.mxu0
        %v1108 = vadd.f32 0.0, %v1107
        %v1109 = vpop.f32.mrf.mxu0
        %v1110 = vadd.f32 0.0, %v1109
        %1111 = vdwg.mxu0
        %v1112 = vadd.f32 %v1014, %v1108
        %v1113 = vadd.f32 %v1015, %v1110
        %1114 = vrot.lane.b32.xlu0 %v333, 111
        %v1115 = vpop.permute.xlu0 %1114
        %1116 = vrot.lane.b32.xlu0 %v334, 111
        %v1117 = vpop.permute.xlu0 %1116
        %vm1118 = vcmask 908288
        %v1119 = vsel %vm1118, %v1115, %v1117
        %v1122 = vsel %vm1118, %v1117, 0.0
        %vm1123 = vmand %vm925, %vm553
        %v1124 = vsel %vm1123, 1, 0
        %v1125 = vlaneseq
        %v1126 = vshrl.u32 %v1125, 7
        %v1127 = vsub.s32 0, %v1126
        %v1128 = vrot.slane %v1124, %v1127
        %v1129 = vlaneseq
        %v1130 = vshrl.u32 %v1129, 7
        %v1131 = vsub.s32 1, %v1130
        %v1132 = vrot.slane %v1124, %v1131
        %vm1133 = vcmp.eq.s32.totalorder %v1128, 1
        %vm1134 = vcmp.eq.s32.totalorder %v1132, 1
        %v1135 = vsel %vm1133, %v1119, 0.0
        %v1136 = vsel %vm1134, %v1122, 0.0
        %v1138 = vsel %vm395, %v345, 0
        %1140 = vmatprep.subr.mxu0 0.0
        %1141 = vmatpush1.msra.mxu0 0.0
        %1142 = vmatprep.subr.mxu0 0.0
        %1143 = vmatpush1.msra.mxu0 0.0
        %1144 = vmatprep.subr.mxu0 0.0
        %1145 = vmatpush1.msra.mxu0 0.0
        %1146 = vmatprep.subr.mxu0 0.0
        %1147 = vmatpush1.msra.mxu0 0.0
        %1148 = vmatprep.subr.mxu0 0.0
        %1149 = vmatpush1.msra.mxu0 0.0
        %1150 = vmatprep.subr.mxu0 0.0
        %1151 = vmatpush1.msra.mxu0 0.0
        %1152 = vmatprep.subr.mxu0 0.0
        %1153 = vmatpush1.msra.mxu0 0.0
        %1154 = vmatprep.subr.mxu0 0.0
        %1155 = vmatpush1.msra.mxu0 0.0
        %1156 = vmatprep.subr.mxu0 0.0
        %1157 = vmatpush1.msra.mxu0 0.0
        %1158 = vmatprep.subr.mxu0 0.0
        %1159 = vmatpush1.msra.mxu0 0.0
        %1160 = vmatprep.subr.mxu0 0.0
        %1161 = vmatpush1.msra.mxu0 0.0
        %1162 = vmatprep.subr.mxu0 0.0
        %1163 = vmatpush1.msra.mxu0 0.0
        %1164 = vmatprep.subr.mxu0 0.0
        %1165 = vmatpush1.msra.mxu0 0.0
        %1166 = vmatprep.subr.mxu0 0.0
        %1167 = vmatpush1.msra.mxu0 0.0
        %1168 = vmatprep.subr.mxu0 0.0
        %1169 = vmatpush1.msra.mxu0 0.0
        %1170 = vmatprep.subr.mxu0 %v1136
        %1171 = vmatpush1.msra.mxu0 %v1135
        %1172 = vmatprep.subr.mxu0 0.0
        %1173 = vmatpush2.msra.mxu0 0.0
        %1174 = vmatprep.subr.mxu0 0.0
        %1175 = vmatpush2.msra.mxu0 0.0
        %1176 = vmatprep.subr.mxu0 0.0
        %1177 = vmatpush2.msra.mxu0 0.0
        %1178 = vmatprep.subr.mxu0 0.0
        %1179 = vmatpush2.msra.mxu0 0.0
        %1180 = vmatprep.subr.mxu0 0.0
        %1181 = vmatpush2.msra.mxu0 0.0
        %1182 = vmatprep.subr.mxu0 0.0
        %1183 = vmatpush2.msra.mxu0 0.0
        %1184 = vmatprep.subr.mxu0 0.0
        %1185 = vmatpush2.msra.mxu0 0.0
        %1186 = vmatprep.subr.mxu0 0.0
        %1187 = vmatpush2.msra.mxu0 0.0
        %1188 = vmatprep.subr.mxu0 0.0
        %1189 = vmatpush2.msra.mxu0 0.0
        %1190 = vmatprep.subr.mxu0 0.0
        %1191 = vmatpush2.msra.mxu0 0.0
        %1192 = vmatprep.subr.mxu0 0.0
        %1193 = vmatpush2.msra.mxu0 0.0
        %1194 = vmatprep.subr.mxu0 0.0
        %1195 = vmatpush2.msra.mxu0 0.0
        %1196 = vmatprep.subr.mxu0 0.0
        %1197 = vmatpush2.msra.mxu0 0.0
        %1198 = vmatprep.subr.mxu0 0.0
        %1199 = vmatpush2.msra.mxu0 0.0
        %1200 = vmatprep.subr.mxu0 0.0
        %1201 = vmatpush2.msra.mxu0 0.0
        %1202 = vmatprep.subr.mxu0 0.0
        %1203 = vmatpush2.msra.mxu0 0.0
        %1204 = vmatprep.mubr.f32.mxu0 0.0
        %1205 = vmatmul.mubr.f32.gmra.mxu0 %v1138
        %v1206 = vpop.f32.mrf.mxu0
        %v1207 = vadd.f32 0.0, %v1206
        %v1208 = vpop.f32.mrf.mxu0
        %v1209 = vadd.f32 0.0, %v1208
        %1210 = vdwg.mxu0
        %v1211 = vadd.f32 %v1112, %v1207
        %v1212 = vadd.f32 %v1113, %v1209
        %v1213 = vld [vmem:[%s2] sm:$0xff]
        %1215 = vset.pattern.permute.xlu0 0
        %1216 = vperm.xlu0 %1215, %v1213
        %v1217 = vpop.permute.xlu0 %1216
        %v1219 = vmul.f32 %v1211, %v1217
        %v1220 = vmul.f32 %v1212, %v1217
        %v1221 = vld [vmem:[%s3] sm:$0xff]
        %1223 = vset.pattern.permute.xlu0 0
        %1224 = vperm.xlu0 %1223, %v1221
        %v1225 = vpop.permute.xlu0 %1224
        %v1227 = vadd.f32 %v1219, %v1225
        %v1228 = vadd.f32 %v1220, %v1225
        %v1229 = vmax.f32 %v1227, 0.0
        %v1230 = vmax.f32 %v1228, 0.0
        %v1231 = vadd.f32 %v1229, %v1230
        %1232 = vadd.xlane.f32.xlu0 %v1231
        %v1233 = vpop.xlane.xlu0 %1232
        %v1234 = vmul.f32 %v1233, 0.00390625
        %v1235 = vld [vmem:[%s4] sm:$0xff]
        %v1237 = vsel %vm395, %v1235, 0
        %1239 = vmatprep.subr.mxu0 0.0
        %1240 = vmatpush1.msra.mxu0 0.0
        %1241 = vmatprep.subr.mxu0 0.0
        %1242 = vmatpush1.msra.mxu0 0.0
        %1243 = vmatprep.subr.mxu0 0.0
        %1244 = vmatpush1.msra.mxu0 0.0
        %1245 = vmatprep.subr.mxu0 0.0
        %1246 = vmatpush1.msra.mxu0 0.0
        %1247 = vmatprep.subr.mxu0 0.0
        %1248 = vmatpush1.msra.mxu0 0.0
        %1249 = vmatprep.subr.mxu0 0.0
        %1250 = vmatpush1.msra.mxu0 0.0
        %1251 = vmatprep.subr.mxu0 0.0
        %1252 = vmatpush1.msra.mxu0 0.0
        %1253 = vmatprep.subr.mxu0 0.0
        %1254 = vmatpush1.msra.mxu0 0.0
        %1255 = vmatprep.subr.mxu0 0.0
        %1256 = vmatpush1.msra.mxu0 0.0
        %1257 = vmatprep.subr.mxu0 0.0
        %1258 = vmatpush1.msra.mxu0 0.0
        %1259 = vmatprep.subr.mxu0 0.0
        %1260 = vmatpush1.msra.mxu0 0.0
        %1261 = vmatprep.subr.mxu0 0.0
        %1262 = vmatpush1.msra.mxu0 0.0
        %1263 = vmatprep.subr.mxu0 0.0
        %1264 = vmatpush1.msra.mxu0 0.0
        %1265 = vmatprep.subr.mxu0 0.0
        %1266 = vmatpush1.msra.mxu0 0.0
        %1267 = vmatprep.subr.mxu0 0.0
        %1268 = vmatpush1.msra.mxu0 0.0
        %1269 = vmatprep.subr.mxu0 0.0
        %1270 = vmatpush1.msra.mxu0 %v1234
        %1271 = vmatprep.subr.mxu0 0.0
        %1272 = vmatpush2.msra.mxu0 0.0
        %1273 = vmatprep.subr.mxu0 0.0
        %1274 = vmatpush2.msra.mxu0 0.0
        %1275 = vmatprep.subr.mxu0 0.0
        %1276 = vmatpush2.msra.mxu0 0.0
        %1277 = vmatprep.subr.mxu0 0.0
        %1278 = vmatpush2.msra.mxu0 0.0
        %1279 = vmatprep.subr.mxu0 0.0
        %1280 = vmatpush2.msra.mxu0 0.0
        %1281 = vmatprep.subr.mxu0 0.0
        %1282 = vmatpush2.msra.mxu0 0.0
        %1283 = vmatprep.subr.mxu0 0.0
        %1284 = vmatpush2.msra.mxu0 0.0
        %1285 = vmatprep.subr.mxu0 0.0
        %1286 = vmatpush2.msra.mxu0 0.0
        %1287 = vmatprep.subr.mxu0 0.0
        %1288 = vmatpush2.msra.mxu0 0.0
        %1289 = vmatprep.subr.mxu0 0.0
        %1290 = vmatpush2.msra.mxu0 0.0
        %1291 = vmatprep.subr.mxu0 0.0
        %1292 = vmatpush2.msra.mxu0 0.0
        %1293 = vmatprep.subr.mxu0 0.0
        %1294 = vmatpush2.msra.mxu0 0.0
        %1295 = vmatprep.subr.mxu0 0.0
        %1296 = vmatpush2.msra.mxu0 0.0
        %1297 = vmatprep.subr.mxu0 0.0
        %1298 = vmatpush2.msra.mxu0 0.0
        %1299 = vmatprep.subr.mxu0 0.0
        %1300 = vmatpush2.msra.mxu0 0.0
        %1301 = vmatprep.subr.mxu0 0.0
        %1302 = vmatpush2.msra.mxu0 0.0
        %1303 = vmatprep.mubr.f32.mxu0 0.0
        %1304 = vmatmul.mubr.f32.gmra.mxu0 %v1237
        %v1305 = vpop.f32.mrf.mxu0
        %v1306 = vadd.f32 0.0, %v1305
        %v1307 = vpop.f32.mrf.mxu0
        %1308 = vdwg.mxu0
        %v1309 = vxor.u32 %v1306, 2147483648
        %v1310 = vmul.f32 %v1309, 1.442695
        %v1311 = vpow.pop %v1310
        %v1312 = vadd.f32 %v1311, 1.0
        %v1313 = vrcp.pop %v1312
        %v1314 = vmul.f32 1.0, %v1313
        %v1315 = vand.u32 2147483647, %v1314
        %vm1316 = vcmp.gt.f32.partialorder %v1315, 0.2
        %v1317 = vsel %vm1316, %v1314, 0.0
        %1319 = vset.pattern.permute.xlu0 0
        %1320 = vperm.xlu0 %1319, %v1317
        %v1321 = vpop.permute.xlu0 %1320
        %v1323 = vmul.f32 %v1229, %v1321
        %v1324 = vmul.f32 %v1230, %v1321
        %v1325 = vmul.f32 %v1323, %v1229
        %v1326 = vmul.f32 %v1324, %v1230
        %v1327 = vrot.slane %v1229, 4
        %v1328 = vadd.f32 %v1229, %v1327
        %v1329 = vrot.slane %v1328, 2
        %v1330 = vadd.f32 %v1328, %v1329
        %v1331 = vrot.slane %v1330, 1
        %v1332 = vadd.f32 %v1330, %v1331
        %v1333 = vrot.slane %v1230, 4
        %v1334 = vadd.f32 %v1230, %v1333
        %v1335 = vrot.slane %v1334, 2
        %v1336 = vadd.f32 %v1334, %v1335
        %v1337 = vrot.slane %v1336, 1
        %v1338 = vadd.f32 %v1336, %v1337
        %v1339 = vrcp.pop 8.0
        %v1340 = vmul.f32 %v1332, %v1339
        %v1341 = vmul.f32 %v1338, %v1339
        %v1342 = vrot.slane %v1229, 4
        %v1343 = vmax.f32 %v1229, %v1342
        %v1344 = vrot.slane %v1343, 2
        %v1345 = vmax.f32 %v1343, %v1344
        %v1346 = vrot.slane %v1345, 1
        %v1347 = vmax.f32 %v1345, %v1346
        %v1348 = vrot.slane %v1230, 4
        %v1349 = vmax.f32 %v1230, %v1348
        %v1350 = vrot.slane %v1349, 2
        %v1351 = vmax.f32 %v1349, %v1350
        %v1352 = vrot.slane %v1351, 1
        %v1353 = vmax.f32 %v1351, %v1352
        %v1354 = vld [vmem:[%s5] sm:$0x3]
        %1357 = vrot.lane.b32.xlu0 %v1340, 34
        %v1358 = vpop.permute.xlu0 %1357
        %1359 = vrot.lane.b32.xlu0 %v1341, 34
        %v1360 = vpop.permute.xlu0 %1359
        %vm1361 = vcmask 277504
        %v1362 = vsel %vm1361, %v1358, %v1360
        %v1364 = vsel %vm1361, 0.0, %v1358
        %vm1365 = vcmp.ge.s32.totalorder %v335, 2
        %vm1366 = vcmp.ge.s32.totalorder %v336, 2
        %vm1367 = vmand %vm1365, %vm1366
        %v1369 = vcombine.low %v1364, %v1362
        %v1371 = vunpack.c.l.s4 1966171168
        %v1372 = vunpack.c.0.s8 %v1371
        %v1373 = vlaneseq
        %v1374 = vshrl.u32 %v1373, 7
        %v1375 = vsub.s32 %v1372, %v1374
        %v1376 = vrot.slane %v1369, %v1375
        %v1378 = vunpack.c.l.s4 1966171168
        %v1379 = vunpack.c.0.s8 %v1378
        %v1380 = vlaneseq
        %v1381 = vshrl.u32 %v1380, 7
        %v1382 = vsub.s32 %v1379, %v1381
        %v1383 = vrot.slane %v1376, %v1382
        %v1385 = vsel %vm1367, %v1383, 0.0
        %1387 = vset.pattern.permute.xlu0 0
        %1388 = vperm.xlu0 %1387, %v1354
        %v1389 = vpop.permute.xlu0 %1388
        %v1390 = vlaneseq
        %v1391 = vshrl.u32 %v1390, 7
        %v1392 = vsub.s32 0, %v1391
        %v1393 = vrot.slane %v1389, %v1392
        %v1395 = vmul.f32 %v1385, %v1393
        %v1396 = vadd.f32 %v1395, 0.0
        %1397 = vrot.lane.b32.xlu0 %v1340, 32
        %v1398 = vpop.permute.xlu0 %1397
        %1399 = vrot.lane.b32.xlu0 %v1341, 32
        %v1400 = vpop.permute.xlu0 %1399
        %vm1401 = vcmask 261120
        %v1402 = vsel %vm1401, %v1398, %v1400
        %v1404 = vsel %vm1401, 0.0, %v1398
        %v1406 = vcombine.low %v1404, %v1402
        %v1408 = vunpack.c.l.s4 1966171168
        %v1409 = vunpack.c.0.s8 %v1408
        %v1410 = vlaneseq
        %v1411 = vshrl.u32 %v1410, 7
        %v1412 = vsub.s32 %v1409, %v1411
        %v1413 = vrot.slane %v1406, %v1412
        %v1415 = vunpack.c.l.s4 1966171168
        %v1416 = vunpack.c.0.s8 %v1415
        %v1417 = vlaneseq
        %v1418 = vshrl.u32 %v1417, 7
        %v1419 = vsub.s32 %v1416, %v1418
        %v1420 = vrot.slane %v1413, %v1419
        %v1422 = vsel %vm1365, %v1420, 0.0
        %1423 = vset.pattern.permute.xlu0 1
        %1424 = vperm.xlu0 %1423, %v1354
        %v1425 = vpop.permute.xlu0 %1424
        %v1426 = vlaneseq
        %v1427 = vshrl.u32 %v1426, 7
        %v1428 = vsub.s32 0, %v1427
        %v1429 = vrot.slane %v1425, %v1428
        %v1431 = vmul.f32 %v1422, %v1429
        %v1432 = vadd.f32 %v1396, %v1431
        %1433 = vrot.lane.b32.xlu0 %v1340, 30
        %v1434 = vpop.permute.xlu0 %1433
        %1435 = vrot.lane.b32.xlu0 %v1341, 30
        %v1436 = vpop.permute.xlu0 %1435
        %vm1437 = vcmask 244736
        %v1438 = vsel %vm1437, %v1434, %v1436
        %v1440 = vsel %vm1437, 0.0, %v1434
        %vm1441 = vcmp.lt.s32.totalorder %v336, 14
        %vm1442 = vmand %vm1365, %vm1441
        %v1444 = vcombine.low %v1440, %v1438
        %v1446 = vunpack.c.l.s4 1966171168
        %v1447 = vunpack.c.0.s8 %v1446
        %v1448 = vlaneseq
        %v1449 = vshrl.u32 %v1448, 7
        %v1450 = vsub.s32 %v1447, %v1449
        %v1451 = vrot.slane %v1444, %v1450
        %v1453 = vunpack.c.l.s4 1966171168
        %v1454 = vunpack.c.0.s8 %v1453
        %v1455 = vlaneseq
        %v1456 = vshrl.u32 %v1455, 7
        %v1457 = vsub.s32 %v1454, %v1456
        %v1458 = vrot.slane %v1451, %v1457
        %v1460 = vsel %vm1442, %v1458, 0.0
        %1461 = vset.pattern.permute.xlu0 2
        %1462 = vperm.xlu0 %1461, %v1354
        %v1463 = vpop.permute.xlu0 %1462
        %v1464 = vlaneseq
        %v1465 = vshrl.u32 %v1464, 7
        %v1466 = vsub.s32 0, %v1465
        %v1467 = vrot.slane %v1463, %v1466
        %v1469 = vmul.f32 %v1460, %v1467
        %v1470 = vadd.f32 %v1432, %v1469
        %1471 = vrot.lane.b32.xlu0 %v1340, 2
        %v1472 = vpop.permute.xlu0 %1471
        %1473 = vrot.lane.b32.xlu0 %v1341, 2
        %v1474 = vpop.permute.xlu0 %1473
        %vm1475 = vcmask 15360
        %v1476 = vsel %vm1475, %v1472, %v1474
        %v1478 = vsel %vm1475, 0.0, %v1472
        %v1480 = vcombine.low %v1478, %v1476
        %v1482 = vunpack.c.l.s4 1966171168
        %v1483 = vunpack.c.0.s8 %v1482
        %v1484 = vlaneseq
        %v1485 = vshrl.u32 %v1484, 7
        %v1486 = vsub.s32 %v1483, %v1485
        %v1487 = vrot.slane %v1480, %v1486
        %v1489 = vunpack.c.l.s4 1966171168
        %v1490 = vunpack.c.0.s8 %v1489
        %v1491 = vlaneseq
        %v1492 = vshrl.u32 %v1491, 7
        %v1493 = vsub.s32 %v1490, %v1492
        %v1494 = vrot.slane %v1487, %v1493
        %v1496 = vsel %vm1366, %v1494, 0.0
        %1497 = vset.pattern.permute.xlu0 3
        %1498 = vperm.xlu0 %1497, %v1354
        %v1499 = vpop.permute.xlu0 %1498
        %v1500 = vlaneseq
        %v1501 = vshrl.u32 %v1500, 7
        %v1502 = vsub.s32 0, %v1501
        %v1503 = vrot.slane %v1499, %v1502
        %v1505 = vmul.f32 %v1496, %v1503
        %v1506 = vadd.f32 %v1470, %v1505
        %1507 = vset.pattern.permute.xlu0 4
        %1508 = vperm.xlu0 %1507, %v1354
        %v1509 = vpop.permute.xlu0 %1508
        %v1511 = vmul.f32 %v1340, %v1509
        %v1512 = vmul.f32 %v1341, %v1509
        %v1515 = vcombine.low %v1511, %v1512
        %v1517 = vunpack.c.l.s4 1966171168
        %v1518 = vunpack.c.0.s8 %v1517
        %v1519 = vlaneseq
        %v1520 = vshrl.u32 %v1519, 7
        %v1521 = vsub.s32 %v1518, %v1520
        %v1522 = vrot.slane %v1515, %v1521
        %v1524 = vunpack.c.l.s4 1966171168
        %v1525 = vunpack.c.0.s8 %v1524
        %v1526 = vlaneseq
        %v1527 = vshrl.u32 %v1526, 7
        %v1528 = vsub.s32 %v1525, %v1527
        %v1529 = vrot.slane %v1522, %v1528
        %v1531 = vadd.f32 %v1506, %v1529
        %1532 = vrot.lane.b32.xlu0 %v1340, 126
        %v1533 = vpop.permute.xlu0 %1532
        %1534 = vrot.lane.b32.xlu0 %v1341, 126
        %v1535 = vpop.permute.xlu0 %1534
        %vm1536 = vcmask 1031168
        %v1537 = vsel %vm1536, %v1533, %v1535
        %v1539 = vsel %vm1536, %v1535, 0.0
        %v1541 = vcombine.low %v1537, %v1539
        %v1543 = vunpack.c.l.s4 1966171168
        %v1544 = vunpack.c.0.s8 %v1543
        %v1545 = vlaneseq
        %v1546 = vshrl.u32 %v1545, 7
        %v1547 = vsub.s32 %v1544, %v1546
        %v1548 = vrot.slane %v1541, %v1547
        %v1550 = vunpack.c.l.s4 1966171168
        %v1551 = vunpack.c.0.s8 %v1550
        %v1552 = vlaneseq
        %v1553 = vshrl.u32 %v1552, 7
        %v1554 = vsub.s32 %v1551, %v1553
        %v1555 = vrot.slane %v1548, %v1554
        %v1557 = vsel %vm1441, %v1555, 0.0
        %1558 = vset.pattern.permute.xlu0 5
        %1559 = vperm.xlu0 %1558, %v1354
        %v1560 = vpop.permute.xlu0 %1559
        %v1561 = vlaneseq
        %v1562 = vshrl.u32 %v1561, 7
        %v1563 = vsub.s32 0, %v1562
        %v1564 = vrot.slane %v1560, %v1563
        %v1566 = vmul.f32 %v1557, %v1564
        %v1567 = vadd.f32 %v1531, %v1566
        %1568 = vrot.lane.b32.xlu0 %v1340, 98
        %v1569 = vpop.permute.xlu0 %1568
        %1570 = vrot.lane.b32.xlu0 %v1341, 98
        %v1571 = vpop.permute.xlu0 %1570
        %vm1572 = vcmask 801792
        %v1573 = vsel %vm1572, %v1569, %v1571
        %v1575 = vsel %vm1572, %v1571, 0.0
        %vm1576 = vcmp.lt.s32.totalorder %v335, 14
        %vm1577 = vmand %vm1576, %vm1366
        %v1579 = vcombine.low %v1573, %v1575
        %v1581 = vunpack.c.l.s4 1966171168
        %v1582 = vunpack.c.0.s8 %v1581
        %v1583 = vlaneseq
        %v1584 = vshrl.u32 %v1583, 7
        %v1585 = vsub.s32 %v1582, %v1584
        %v1586 = vrot.slane %v1579, %v1585
        %v1588 = vunpack.c.l.s4 1966171168
        %v1589 = vunpack.c.0.s8 %v1588
        %v1590 = vlaneseq
        %v1591 = vshrl.u32 %v1590, 7
        %v1592 = vsub.s32 %v1589, %v1591
        %v1593 = vrot.slane %v1586, %v1592
        %v1595 = vsel %vm1577, %v1593, 0.0
        %1596 = vset.pattern.permute.xlu0 6
        %1597 = vperm.xlu0 %1596, %v1354
        %v1598 = vpop.permute.xlu0 %1597
        %v1599 = vlaneseq
        %v1600 = vshrl.u32 %v1599, 7
        %v1601 = vsub.s32 0, %v1600
        %v1602 = vrot.slane %v1598, %v1601
        %v1604 = vmul.f32 %v1595, %v1602
        %v1605 = vadd.f32 %v1567, %v1604
        %1606 = vrot.lane.b32.xlu0 %v1340, 96
        %v1607 = vpop.permute.xlu0 %1606
        %1608 = vrot.lane.b32.xlu0 %v1341, 96
        %v1609 = vpop.permute.xlu0 %1608
        %vm1610 = vcmask 785408
        %v1611 = vsel %vm1610, %v1607, %v1609
        %v1613 = vsel %vm1610, %v1609, 0.0
        %v1615 = vcombine.low %v1611, %v1613
        %v1617 = vunpack.c.l.s4 1966171168
        %v1618 = vunpack.c.0.s8 %v1617
        %v1619 = vlaneseq
        %v1620 = vshrl.u32 %v1619, 7
        %v1621 = vsub.s32 %v1618, %v1620
        %v1622 = vrot.slane %v1615, %v1621
        %v1624 = vunpack.c.l.s4 1966171168
        %v1625 = vunpack.c.0.s8 %v1624
        %v1626 = vlaneseq
        %v1627 = vshrl.u32 %v1626, 7
        %v1628 = vsub.s32 %v1625, %v1627
        %v1629 = vrot.slane %v1622, %v1628
        %v1631 = vsel %vm1576, %v1629, 0.0
        %1632 = vset.pattern.permute.xlu0 7
        %1633 = vperm.xlu0 %1632, %v1354
        %v1634 = vpop.permute.xlu0 %1633
        %v1635 = vlaneseq
        %v1636 = vshrl.u32 %v1635, 7
        %v1637 = vsub.s32 0, %v1636
        %v1638 = vrot.slane %v1634, %v1637
        %v1640 = vmul.f32 %v1631, %v1638
        %v1641 = vadd.f32 %v1605, %v1640
        %1642 = vrot.lane.b32.xlu0 %v1340, 94
        %v1643 = vpop.permute.xlu0 %1642
        %1644 = vrot.lane.b32.xlu0 %v1341, 94
        %v1645 = vpop.permute.xlu0 %1644
        %vm1646 = vcmask 769024
        %v1647 = vsel %vm1646, %v1643, %v1645
        %v1649 = vsel %vm1646, %v1645, 0.0
        %vm1650 = vmand %vm1576, %vm1441
        %v1652 = vcombine.low %v1647, %v1649
        %v1654 = vunpack.c.l.s4 1966171168
        %v1655 = vunpack.c.0.s8 %v1654
        %v1656 = vlaneseq
        %v1657 = vshrl.u32 %v1656, 7
        %v1658 = vsub.s32 %v1655, %v1657
        %v1659 = vrot.slane %v1652, %v1658
        %v1661 = vunpack.c.l.s4 1966171168
        %v1662 = vunpack.c.0.s8 %v1661
        %v1663 = vlaneseq
        %v1664 = vshrl.u32 %v1663, 7
        %v1665 = vsub.s32 %v1662, %v1664
        %v1666 = vrot.slane %v1659, %v1665
        %v1668 = vsel %vm1650, %v1666, 0.0
        %1669 = vset.pattern.permute.xlu0 8
        %1670 = vperm.xlu0 %1669, %v1354
        %v1671 = vpop.permute.xlu0 %1670
        %v1672 = vlaneseq
        %v1673 = vshrl.u32 %v1672, 7
        %v1674 = vsub.s32 0, %v1673
        %v1675 = vrot.slane %v1671, %v1674
        %v1677 = vmul.f32 %v1668, %v1675
        %v1678 = vadd.f32 %v1641, %v1677
        %1681 = vrot.lane.b32.xlu0 %v1347, 34
        %v1682 = vpop.permute.xlu0 %1681
        %1683 = vrot.lane.b32.xlu0 %v1353, 34
        %v1684 = vpop.permute.xlu0 %1683
        %v1685 = vsel %vm1361, %v1682, %v1684
        %v1687 = vsel %vm1361, 0.0, %v1682
        %v1689 = vcombine.low %v1687, %v1685
        %v1691 = vunpack.c.l.s4 1966171168
        %v1692 = vunpack.c.0.s8 %v1691
        %v1693 = vlaneseq
        %v1694 = vshrl.u32 %v1693, 7
        %v1695 = vsub.s32 %v1692, %v1694
        %v1696 = vrot.slane %v1689, %v1695
        %v1698 = vunpack.c.l.s4 1966171168
        %v1699 = vunpack.c.0.s8 %v1698
        %v1700 = vlaneseq
        %v1701 = vshrl.u32 %v1700, 7
        %v1702 = vsub.s32 %v1699, %v1701
        %v1703 = vrot.slane %v1696, %v1702
        %v1705 = vsel %vm1367, %v1703, 0.0
        %v1706 = vlaneseq
        %v1707 = vshrl.u32 %v1706, 7
        %v1708 = vsub.s32 1, %v1707
        %v1709 = vrot.slane %v1389, %v1708
        %v1711 = vmul.f32 %v1705, %v1709
        %v1712 = vadd.f32 %v1678, %v1711
        %1713 = vrot.lane.b32.xlu0 %v1347, 32
        %v1714 = vpop.permute.xlu0 %1713
        %1715 = vrot.lane.b32.xlu0 %v1353, 32
        %v1716 = vpop.permute.xlu0 %1715
        %v1717 = vsel %vm1401, %v1714, %v1716
        %v1719 = vsel %vm1401, 0.0, %v1714
        %v1721 = vcombine.low %v1719, %v1717
        %v1723 = vunpack.c.l.s4 1966171168
        %v1724 = vunpack.c.0.s8 %v1723
        %v1725 = vlaneseq
        %v1726 = vshrl.u32 %v1725, 7
        %v1727 = vsub.s32 %v1724, %v1726
        %v1728 = vrot.slane %v1721, %v1727
        %v1730 = vunpack.c.l.s4 1966171168
        %v1731 = vunpack.c.0.s8 %v1730
        %v1732 = vlaneseq
        %v1733 = vshrl.u32 %v1732, 7
        %v1734 = vsub.s32 %v1731, %v1733
        %v1735 = vrot.slane %v1728, %v1734
        %v1737 = vsel %vm1365, %v1735, 0.0
        %v1738 = vlaneseq
        %v1739 = vshrl.u32 %v1738, 7
        %v1740 = vsub.s32 1, %v1739
        %v1741 = vrot.slane %v1425, %v1740
        %v1743 = vmul.f32 %v1737, %v1741
        %v1744 = vadd.f32 %v1712, %v1743
        %1745 = vrot.lane.b32.xlu0 %v1347, 30
        %v1746 = vpop.permute.xlu0 %1745
        %1747 = vrot.lane.b32.xlu0 %v1353, 30
        %v1748 = vpop.permute.xlu0 %1747
        %v1749 = vsel %vm1437, %v1746, %v1748
        %v1751 = vsel %vm1437, 0.0, %v1746
        %v1753 = vcombine.low %v1751, %v1749
        %v1755 = vunpack.c.l.s4 1966171168
        %v1756 = vunpack.c.0.s8 %v1755
        %v1757 = vlaneseq
        %v1758 = vshrl.u32 %v1757, 7
        %v1759 = vsub.s32 %v1756, %v1758
        %v1760 = vrot.slane %v1753, %v1759
        %v1762 = vunpack.c.l.s4 1966171168
        %v1763 = vunpack.c.0.s8 %v1762
        %v1764 = vlaneseq
        %v1765 = vshrl.u32 %v1764, 7
        %v1766 = vsub.s32 %v1763, %v1765
        %v1767 = vrot.slane %v1760, %v1766
        %v1769 = vsel %vm1442, %v1767, 0.0
        %v1770 = vlaneseq
        %v1771 = vshrl.u32 %v1770, 7
        %v1772 = vsub.s32 1, %v1771
        %v1773 = vrot.slane %v1463, %v1772
        %v1775 = vmul.f32 %v1769, %v1773
        %v1776 = vadd.f32 %v1744, %v1775
        %1777 = vrot.lane.b32.xlu0 %v1347, 2
        %v1778 = vpop.permute.xlu0 %1777
        %1779 = vrot.lane.b32.xlu0 %v1353, 2
        %v1780 = vpop.permute.xlu0 %1779
        %v1781 = vsel %vm1475, %v1778, %v1780
        %v1783 = vsel %vm1475, 0.0, %v1778
        %v1785 = vcombine.low %v1783, %v1781
        %v1787 = vunpack.c.l.s4 1966171168
        %v1788 = vunpack.c.0.s8 %v1787
        %v1789 = vlaneseq
        %v1790 = vshrl.u32 %v1789, 7
        %v1791 = vsub.s32 %v1788, %v1790
        %v1792 = vrot.slane %v1785, %v1791
        %v1794 = vunpack.c.l.s4 1966171168
        %v1795 = vunpack.c.0.s8 %v1794
        %v1796 = vlaneseq
        %v1797 = vshrl.u32 %v1796, 7
        %v1798 = vsub.s32 %v1795, %v1797
        %v1799 = vrot.slane %v1792, %v1798
        %v1801 = vsel %vm1366, %v1799, 0.0
        %v1802 = vlaneseq
        %v1803 = vshrl.u32 %v1802, 7
        %v1804 = vsub.s32 1, %v1803
        %v1805 = vrot.slane %v1499, %v1804
        %v1807 = vmul.f32 %v1801, %v1805
        %v1808 = vadd.f32 %v1776, %v1807
        %v1809 = vmul.f32 %v1347, %v1509
        %v1810 = vmul.f32 %v1353, %v1509
        %v1813 = vcombine.low %v1809, %v1810
        %v1815 = vunpack.c.l.s4 1966171168
        %v1816 = vunpack.c.0.s8 %v1815
        %v1817 = vlaneseq
        %v1818 = vshrl.u32 %v1817, 7
        %v1819 = vsub.s32 %v1816, %v1818
        %v1820 = vrot.slane %v1813, %v1819
        %v1821 = vcombine.high %v1820, %v1820
        %v1823 = vunpack.c.l.s4 1966171168
        %v1824 = vunpack.c.0.s8 %v1823
        %v1825 = vlaneseq
        %v1826 = vshrl.u32 %v1825, 7
        %v1827 = vsub.s32 %v1824, %v1826
        %v1828 = vrot.slane %v1821, %v1827
        %v1830 = vadd.f32 %v1808, %v1828
        %1831 = vrot.lane.b32.xlu0 %v1347, 126
        %v1832 = vpop.permute.xlu0 %1831
        %1833 = vrot.lane.b32.xlu0 %v1353, 126
        %v1834 = vpop.permute.xlu0 %1833
        %v1835 = vsel %vm1536, %v1832, %v1834
        %v1837 = vsel %vm1536, %v1834, 0.0
        %v1839 = vcombine.low %v1835, %v1837
        %v1841 = vunpack.c.l.s4 1966171168
        %v1842 = vunpack.c.0.s8 %v1841
        %v1843 = vlaneseq
        %v1844 = vshrl.u32 %v1843, 7
        %v1845 = vsub.s32 %v1842, %v1844
        %v1846 = vrot.slane %v1839, %v1845
        %v1848 = vunpack.c.l.s4 1966171168
        %v1849 = vunpack.c.0.s8 %v1848
        %v1850 = vlaneseq
        %v1851 = vshrl.u32 %v1850, 7
        %v1852 = vsub.s32 %v1849, %v1851
        %v1853 = vrot.slane %v1846, %v1852
        %v1855 = vsel %vm1441, %v1853, 0.0
        %v1856 = vlaneseq
        %v1857 = vshrl.u32 %v1856, 7
        %v1858 = vsub.s32 1, %v1857
        %v1859 = vrot.slane %v1560, %v1858
        %v1861 = vmul.f32 %v1855, %v1859
        %v1862 = vadd.f32 %v1830, %v1861
        %1863 = vrot.lane.b32.xlu0 %v1347, 98
        %v1864 = vpop.permute.xlu0 %1863
        %1865 = vrot.lane.b32.xlu0 %v1353, 98
        %v1866 = vpop.permute.xlu0 %1865
        %v1867 = vsel %vm1572, %v1864, %v1866
        %v1869 = vsel %vm1572, %v1866, 0.0
        %v1871 = vcombine.low %v1867, %v1869
        %v1873 = vunpack.c.l.s4 1966171168
        %v1874 = vunpack.c.0.s8 %v1873
        %v1875 = vlaneseq
        %v1876 = vshrl.u32 %v1875, 7
        %v1877 = vsub.s32 %v1874, %v1876
        %v1878 = vrot.slane %v1871, %v1877
        %v1880 = vunpack.c.l.s4 1966171168
        %v1881 = vunpack.c.0.s8 %v1880
        %v1882 = vlaneseq
        %v1883 = vshrl.u32 %v1882, 7
        %v1884 = vsub.s32 %v1881, %v1883
        %v1885 = vrot.slane %v1878, %v1884
        %v1887 = vsel %vm1577, %v1885, 0.0
        %v1888 = vlaneseq
        %v1889 = vshrl.u32 %v1888, 7
        %v1890 = vsub.s32 1, %v1889
        %v1891 = vrot.slane %v1598, %v1890
        %v1893 = vmul.f32 %v1887, %v1891
        %v1894 = vadd.f32 %v1862, %v1893
        %1895 = vrot.lane.b32.xlu0 %v1347, 96
        %v1896 = vpop.permute.xlu0 %1895
        %1897 = vrot.lane.b32.xlu0 %v1353, 96
        %v1898 = vpop.permute.xlu0 %1897
        %v1899 = vsel %vm1610, %v1896, %v1898
        %v1901 = vsel %vm1610, %v1898, 0.0
        %v1903 = vcombine.low %v1899, %v1901
        %v1905 = vunpack.c.l.s4 1966171168
        %v1906 = vunpack.c.0.s8 %v1905
        %v1907 = vlaneseq
        %v1908 = vshrl.u32 %v1907, 7
        %v1909 = vsub.s32 %v1906, %v1908
        %v1910 = vrot.slane %v1903, %v1909
        %v1912 = vunpack.c.l.s4 1966171168
        %v1913 = vunpack.c.0.s8 %v1912
        %v1914 = vlaneseq
        %v1915 = vshrl.u32 %v1914, 7
        %v1916 = vsub.s32 %v1913, %v1915
        %v1917 = vrot.slane %v1910, %v1916
        %v1919 = vsel %vm1576, %v1917, 0.0
        %v1920 = vlaneseq
        %v1921 = vshrl.u32 %v1920, 7
        %v1922 = vsub.s32 1, %v1921
        %v1923 = vrot.slane %v1634, %v1922
        %v1925 = vmul.f32 %v1919, %v1923
        %v1926 = vadd.f32 %v1894, %v1925
        %1927 = vrot.lane.b32.xlu0 %v1347, 94
        %v1928 = vpop.permute.xlu0 %1927
        %1929 = vrot.lane.b32.xlu0 %v1353, 94
        %v1930 = vpop.permute.xlu0 %1929
        %v1931 = vsel %vm1646, %v1928, %v1930
        %v1933 = vsel %vm1646, %v1930, 0.0
        %v1935 = vcombine.low %v1931, %v1933
        %v1937 = vunpack.c.l.s4 1966171168
        %v1938 = vunpack.c.0.s8 %v1937
        %v1939 = vlaneseq
        %v1940 = vshrl.u32 %v1939, 7
        %v1941 = vsub.s32 %v1938, %v1940
        %v1942 = vrot.slane %v1935, %v1941
        %v1944 = vunpack.c.l.s4 1966171168
        %v1945 = vunpack.c.0.s8 %v1944
        %v1946 = vlaneseq
        %v1947 = vshrl.u32 %v1946, 7
        %v1948 = vsub.s32 %v1945, %v1947
        %v1949 = vrot.slane %v1942, %v1948
        %v1951 = vsel %vm1650, %v1949, 0.0
        %v1952 = vlaneseq
        %v1953 = vshrl.u32 %v1952, 7
        %v1954 = vsub.s32 1, %v1953
        %v1955 = vrot.slane %v1671, %v1954
        %v1957 = vmul.f32 %v1951, %v1955
        %v1958 = vadd.f32 %v1926, %v1957
        %v1959 = vld [vmem:[#allocation2] sm:$0x1]
        %1961 = vset.pattern.permute.xlu0 0
        %1962 = vperm.xlu0 %1961, %v1959
        %v1963 = vpop.permute.xlu0 %1962
        %v1965 = vlaneseq
        %v1966 = vshrl.u32 %v1965, 7
        %v1967 = vsub.s32 0, %v1966
        %v1968 = vrot.slane %v1963, %v1967
        %v1969 = vadd.f32 %v1958, %v1968
        %v1970 = vxor.u32 %v1969, 2147483648
        %v1971 = vmul.f32 %v1970, 1.442695
        %v1972 = vpow.pop %v1971
        %v1973 = vadd.f32 %v1972, 1.0
        %v1974 = vrcp.pop %v1973
        %v1975 = vmul.f32 1.0, %v1974
        %v1976 = vand.u32 2147483647, %v1975
        %vm1977 = vcmp.gt.f32.partialorder %v1976, 0.2
        %v1978 = vsel %vm1977, %v1975, 0.0
        %v1980 = vlaneseq
        %v1981 = vshrl.u32 %v1980, 7
        %v1982 = vsub.s32 0, %v1981
        %v1983 = vrot.slane %v1978, %v1982
        %v1984 = vlaneseq
        %v1985 = vshrl.u32 %v1984, 7
        %v1986 = vsub.s32 1, %v1985
        %v1987 = vrot.slane %v1978, %v1986
        %v1990 = vmul.f32 %v1983, %v1229
        %v1991 = vmul.f32 %v1987, %v1230
        %v1992 = vadd.f32 %v1325, %v333
        %v1993 = vadd.f32 %v1326, %v334
        %v1994 = vmax.f32 %v1992, 0.0
        %v1995 = vmax.f32 %v1993, 0.0
        %1996 = vst [vmem:[%s327] sm:$0xff] %v1994
        %1997 = vst [vmem:[%s327 + $0x8] sm:$0xff] %v1995
        %v1998 = vadd.f32 %v1990, %v333
        %v1999 = vadd.f32 %v1991, %v334
        %v2000 = vmax.f32 %v1998, 0.0
        %v2001 = vmax.f32 %v1999, 0.0
        %s2002 = scalar_lea.vmem %s327, 16 [#allocation3]
        %2003 = vst [vmem:[%s2002] sm:$0xff] %v2000
        %2004 = vst [vmem:[%s2002 + $0x8] sm:$0xff] %v2001
        %s2005 = sand.u32 %s227, 1
        %s2006 = scalar_lea.sflag [#allocation4], %s2005
        %s2007 = sand.u32 %s227, 1
        %s2008 = smul.addr %s2007, 32
        %s2009 = scalar_lea.vmem [#allocation3], %s2008
        // Predicated region
        $region57: #{tpu_custom_call.1} parent=55 // pred_check
          %p2010 = pneg %p237
        $region58: #{tpu_custom_call.1} parent=55 // pred_check_branch
          %2012 = sbr.rel (%p2010) target = $region60
        $region59: #{tpu_custom_call.1} parent=55 // pred_region
          %s2014 = ssub.s32 512, 512
          %2015 = vsyncadd %s2006, %s2014
          %s2016 = smul.addr %s25, 4
          %s2017 = smul.addr %s2016, 128
          %s2018 = scalar_lea.hbm %s9, %s2017
          %s2019 = sshll.u32 %s2009, 4
          %s2020 = int_to_ptr.vmem [resolvable:$true] %s2019
          %2025 = dma.vmem_to_hbm [thread:$0]  %s2020, 512, %s2018, %s2006, 256, 256, 16
        $region60: #{tpu_custom_call.1} parent=55 // pred_fallthru
          _
      $region56: #{tpu_custom_call.1} parent=5 // pred_fallthru
        _
      %p2026 = scmp.le.s32.totalorder 2, %s20
      // Predicated region
      $region61: #{tpu_custom_call.1} parent=5 // pred_check
        %p2027 = pneg %p2026
      $region62: #{tpu_custom_call.1} parent=5 // pred_check_branch
        %2029 = sbr.rel (%p2027) target = $region64
      $region63: #{tpu_custom_call.1} parent=5 // pred_region
        %s2030 = ssub.s32 %s20, 2
        // Predicated region
        $region65: #{tpu_custom_call.1} parent=63 // pred_check
          %p2031 = pneg %p243
        $region66: #{tpu_custom_call.1} parent=63 // pred_check_branch
          %2033 = sbr.rel (%p2031) target = $region68
        $region67: #{tpu_custom_call.1} parent=63 // pred_region
          %s2034 = sand.u32 %s228, 1
          %s2035 = scalar_lea.sflag [#allocation4], %s2034
          %s2036 = sand.u32 %s228, 1
          %s2037 = smul.addr %s2036, 32
          %s2038 = scalar_lea.vmem [#allocation3], %s2037
          %2039 = dma.done %s2035, 512
        $region68: #{tpu_custom_call.1} parent=63 // pred_fallthru
          _
      $region64: #{tpu_custom_call.1} parent=5 // pred_fallthru
        _
    $region6: #{tpu_custom_call.1} parent=1 // loop_footer
      %s24 = sadd.s32 1, %s20
    $region7: #{tpu_custom_call.1} parent=1 // loop_footer_branch
      %19 = sbr.rel target = $region3
    $region8: #{tpu_custom_call.1} parent=1 // loop_exit
      _
    %2040 = vsyncpa [#allocation4], 1
    %s2041 = scalar_lea.sflag [#allocation4], 1
    %2042 = vsyncpa %s2041, 1

</llo_original>
